<compile_context>
chip_gen: v7x
topology: tpu7x:2x2x1
jax: 0.10.0
libtpu: 0.0.40
codegen_flags: <defaults>
</compile_context>

<pallas_src>
import jax
import jax.numpy as jnp
from jax.experimental import pallas as pl
from jax.experimental.pallas import tpu as pltpu

# ----- model hyper-parameters (small, synthetic) -----
B, S = 2, 8                  # batch, sequence length
H, NUM_HEADS, HEAD_DIM = 32, 2, 16
DH = NUM_HEADS * HEAD_DIM    # fused head width (== H here)
QKV = 3 * DH
FFN = 64
VOCAB = 50
NUM_LAYERS = 2
LN_EPS = 1e-12
TARGET_TOKEN_IDX = 0         # self.target_token_idx in the PyTorch module

# ----- kernel tiling -----
B_PER_BLOCK = B                      # batch elements per grid block ("parallel" axis)
NUM_BATCH_BLOCKS = B // B_PER_BLOCK  # 1 block at toy size (shards across TCs on v7x)
BLK_TOK = B_PER_BLOCK * S            # token rows carried per block


def _layernorm(x, g, b, eps=LN_EPS):
    mu = jnp.mean(x, axis=-1, keepdims=True)
    var = jnp.mean((x - mu) ** 2, axis=-1, keepdims=True)
    return (x - mu) * jax.lax.rsqrt(var + eps) * g + b


# Exact-erf GELU (HF BERT) via Abramowitz & Stegun 7.1.26 (|err| < 1.5e-7):
# only needs exp / mul / where, so it lowers on every TPU generation.
_ERF_P = 0.3275911
_ERF_A1, _ERF_A2, _ERF_A3, _ERF_A4, _ERF_A5 = (
    0.254829592, -0.284496736, 1.421413741, -1.453152027, 1.061405429)


def _erf(x):
    ax = jnp.abs(x)
    t = 1.0 / (1.0 + _ERF_P * ax)
    poly = ((((_ERF_A5 * t + _ERF_A4) * t + _ERF_A3) * t + _ERF_A2) * t + _ERF_A1) * t
    y = 1.0 - poly * jnp.exp(-ax * ax)
    return jnp.where(x >= 0.0, y, -y)


def _gelu_exact(x):
    return 0.5 * x * (1.0 + _erf(x * 0.7071067811865476))


# ---------------------------------------------------------------------------
# Kernel: one encoder layer per grid step (layer axis = inner "arbitrary" axis).
# Activations persist in a VMEM scratch; only the CLS rows are written out.
# ---------------------------------------------------------------------------
def encoder_layer_kernel(x_ref, bias_ref,
                         wqkv_ref, bqkv_ref, wo_ref, bo_ref,
                         ln1g_ref, ln1b_ref, w1_ref, b1_ref,
                         w2_ref, b2_ref, ln2g_ref, ln2b_ref,
                         out_ref, x_scr):
    l = pl.program_id(1)                            # layer index

    @pl.when(l == 0)
    def _():                                        # load embedded tokens once per block
        x_scr[...] = x_ref[...]

    x = x_scr[...]                                  # [BLK_TOK, H] f32 activations
    bias = bias_ref[...]                            # [B_PER_BLOCK, S] additive key mask

    # ---- fused QKV projection: one [BLK_TOK,H] x [H,3*DH] bf16 matmul ----
    # (1/sqrt(head_dim) score scale pre-folded into the Q third at init)
    qkv = jnp.dot(x.astype(jnp.bfloat16), wqkv_ref[...],
                  preferred_element_type=jnp.float32) + bqkv_ref[...]      # [BLK_TOK, QKV]

    # ---- attention: per-head dots batched over batch (no .T, no concatenates) ----
    ctx_heads = []
    for h in range(NUM_HEADS):
        qh = qkv[:, h * HEAD_DIM:(h + 1) * HEAD_DIM].reshape(B_PER_BLOCK, S, HEAD_DIM)
        kh = qkv[:, DH + h * HEAD_DIM:DH + (h + 1) * HEAD_DIM].reshape(
            B_PER_BLOCK, S, HEAD_DIM)
        vh = qkv[:, 2 * DH + h * HEAD_DIM:2 * DH + (h + 1) * HEAD_DIM].reshape(
            B_PER_BLOCK, S, HEAD_DIM)
        # contraction on the last dim of both operands -> no explicit transpose
        s = jnp.einsum("bqd,bkd->bqk",
                       qh.astype(jnp.bfloat16), kh.astype(jnp.bfloat16),
                       preferred_element_type=jnp.float32)                 # [BB, S, S]
        s = s + bias[:, None, :]
        s = s - jnp.max(s, axis=-1, keepdims=True)
        p = jnp.exp(s)
        # softmax divide on the EUP (approximate reciprocal); VPU slot stays free
        p = p * pl.reciprocal(jnp.sum(p, axis=-1, keepdims=True), approx=True)
        ctx_heads.append(
            jnp.einsum("bqk,bkd->bqd",
                       p.astype(jnp.bfloat16), vh.astype(jnp.bfloat16),
                       preferred_element_type=jnp.float32))                # [BB, S, HD]

    wo = wo_ref[...]                                # [DH, H] bf16

    def ffn_ln(attn, res):
        h1 = _layernorm(res + attn, ln1g_ref[...], ln1b_ref[...])
        f = jnp.dot(h1.astype(jnp.bfloat16), w1_ref[...],
                    preferred_element_type=jnp.float32) + b1_ref[...]
        f = _gelu_exact(f)
        f = jnp.dot(f.astype(jnp.bfloat16), w2_ref[...],
                    preferred_element_type=jnp.float32) + b2_ref[...]
        return _layernorm(h1 + f, ln2g_ref[...], ln2b_ref[...])

    @pl.when(l < NUM_LAYERS - 1)
    def _():
        # full-width epilogue: per-head partial output projections summed (== concat @ wo)
        attn = bo_ref[...] + sum(
            jnp.dot(ctx_heads[h].reshape(BLK_TOK, HEAD_DIM).astype(jnp.bfloat16),
                    wo[h * HEAD_DIM:(h + 1) * HEAD_DIM, :],
                    preferred_element_type=jnp.float32)
            for h in range(NUM_HEADS))                                     # [BLK_TOK, H]
        x_scr[...] = ffn_ln(attn, x)                # carry activations to the next layer

    @pl.when(l == NUM_LAYERS - 1)
    def _():
        # CLS-only epilogue: wo / FFN / LayerNorms run on B rows instead of B*S rows
        attn = bo_ref[...] + sum(
            jnp.dot(ctx_heads[h][:, TARGET_TOKEN_IDX, :].astype(jnp.bfloat16),
                    wo[h * HEAD_DIM:(h + 1) * HEAD_DIM, :],
                    preferred_element_type=jnp.float32)
            for h in range(NUM_HEADS))                                     # [BB, H]
        x_cls = x.reshape(B_PER_BLOCK, S, H)[:, TARGET_TOKEN_IDX, :]       # [BB, H]
        out_ref[...] = ffn_ln(attn, x_cls).astype(out_ref.dtype)


_W_ORDER = ["wqkv", "bqkv", "wo", "bo", "ln1g", "ln1b",
            "w1", "b1", "w2", "b2", "ln2g", "ln2b"]


def _stacked_weight_spec(shape):
    # one layer's slab per grid step; leading layer axis squeezed out of the kernel Ref,
    # Pallas double-buffers the next layer's DMA behind the current layer's compute.
    nd = len(shape)
    return pl.BlockSpec((None,) + tuple(shape[1:]),
                        lambda b, l, _nd=nd: (l,) + (0,) * (_nd - 1))


def encoder_stack(x2d, mask_bias, stack):
    """x2d: [B*S, H] f32; mask_bias: [B, S] f32; stack: dict of [L, ...] weights."""
    weights = [stack[k] for k in _W_ORDER]
    in_specs = [
        pl.BlockSpec((BLK_TOK, H), lambda b, l: (b, 0)),        # embedded tokens
        pl.BlockSpec((B_PER_BLOCK, S), lambda b, l: (b, 0)),    # additive key mask
    ] + [_stacked_weight_spec(w.shape) for w in weights]
    return pl.pallas_call(
        encoder_layer_kernel,
        out_shape=jax.ShapeDtypeStruct((B, H), jnp.float32),
        grid_spec=pltpu.PrefetchScalarGridSpec(
            num_scalar_prefetch=0,
            grid=(NUM_BATCH_BLOCKS, NUM_LAYERS),                # (batch blocks, layers)
            in_specs=in_specs,
            out_specs=pl.BlockSpec((B_PER_BLOCK, H), lambda b, l: (b, 0)),
            scratch_shapes=[pltpu.VMEM((BLK_TOK, H), jnp.float32)],
        ),
        compiler_params=pltpu.CompilerParams(
            dimension_semantics=("parallel", "arbitrary"),
            vmem_limit_bytes=32 * 1024 * 1024,
        ),
    )(x2d, mask_bias, *weights)


# ---------------------------------------------------------------------------
# Parameter init (deterministic, synthetic — replaces AutoModel.from_pretrained).
# QKV fused, score scale folded in, matmul weights stored bf16, stacked over layers.
# ---------------------------------------------------------------------------
def init_params(key):
    ks = jax.random.split(key, 12)
    std = 0.02
    nrm = lambda k, sh: jax.random.normal(k, sh, jnp.float32) * std
    L = NUM_LAYERS
    scale = 1.0 / (HEAD_DIM ** 0.5)
    wq, wk, wv = nrm(ks[0], (L, H, DH)), nrm(ks[1], (L, H, DH)), nrm(ks[2], (L, H, DH))
    bq, bk, bv = nrm(ks[3], (L, 1, DH)), nrm(ks[4], (L, 1, DH)), nrm(ks[5], (L, 1, DH))
    bf = jnp.bfloat16
    stack = dict(
        wqkv=jnp.concatenate([wq * scale, wk, wv], axis=-1).astype(bf),   # [L, H, 3*DH]
        bqkv=jnp.concatenate([bq * scale, bk, bv], axis=-1),              # [L, 1, 3*DH] f32
        wo=nrm(ks[6], (L, DH, H)).astype(bf), bo=nrm(ks[7], (L, 1, H)),
        ln1g=jnp.ones((L, 1, H), jnp.float32), ln1b=jnp.zeros((L, 1, H), jnp.float32),
        w1=nrm(ks[8], (L, H, FFN)).astype(bf), b1=jnp.zeros((L, 1, FFN), jnp.float32),
        w2=nrm(ks[9], (L, FFN, H)).astype(bf), b2=jnp.zeros((L, 1, H), jnp.float32),
        ln2g=jnp.ones((L, 1, H), jnp.float32), ln2b=jnp.zeros((L, 1, H), jnp.float32),
    )
    return dict(
        tok_emb=nrm(ks[10], (VOCAB, H)),
        pos_emb=nrm(ks[11], (S, H)),
        emb_ln_g=jnp.ones((H,), jnp.float32),
        emb_ln_b=jnp.zeros((H,), jnp.float32),
        stack=stack,
    )


# ---------------------------------------------------------------------------
# Forward pass: TextEncoder.forward(input_ids, attention_mask)
# ---------------------------------------------------------------------------
def text_encoder_forward(input_ids, attention_mask, params):
    # glue: embedding gather + embedding layernorm (plain JAX)
    tok = jnp.take(params["tok_emb"], input_ids, axis=0)                  # [B, S, H]
    x = _layernorm(tok + params["pos_emb"][None],
                   params["emb_ln_g"], params["emb_ln_b"])
    mask_bias = (1.0 - attention_mask.astype(jnp.float32)) * (-1e9)       # [B, S]
    return encoder_stack(x.reshape(B * S, H), mask_bias, params["stack"])  # [B, H] CLS rows


# ---------------------------------------------------------------------------
# Pure-JAX reference (f32 math, exact softmax / erf GELU) for a correctness check.
# ---------------------------------------------------------------------------
def _ref_forward(input_ids, attention_mask, params):
    st = params["stack"]
    tok = jnp.take(params["tok_emb"], input_ids, axis=0)
    x = _layernorm(tok + params["pos_emb"][None],
                   params["emb_ln_g"], params["emb_ln_b"])
    bias = (1.0 - attention_mask.astype(jnp.float32)) * (-1e9)            # [B, S]
    for l in range(NUM_LAYERS):
        qkv = x @ st["wqkv"][l].astype(jnp.float32) + st["bqkv"][l]       # [B, S, 3*DH]
        q, k, v = qkv[..., :DH], qkv[..., DH:2 * DH], qkv[..., 2 * DH:]
        split = lambda t: t.reshape(B, S, NUM_HEADS, HEAD_DIM).transpose(0, 2, 1, 3)
        qh, kh, vh = split(q), split(k), split(v)
        s = jnp.einsum("bhqd,bhkd->bhqk", qh, kh) + bias[:, None, None, :]
        p = jax.nn.softmax(s, axis=-1)
        ctx = jnp.einsum("bhqk,bhkd->bhqd", p, vh)
        ctx = ctx.transpose(0, 2, 1, 3).reshape(B, S, DH)
        attn = ctx @ st["wo"][l].astype(jnp.float32) + st["bo"][l]
        h1 = _layernorm(x + attn, st["ln1g"][l], st["ln1b"][l])
        f = jax.nn.gelu(h1 @ st["w1"][l].astype(jnp.float32) + st["b1"][l],
                        approximate=False)
        f = f @ st["w2"][l].astype(jnp.float32) + st["b2"][l]
        x = _layernorm(h1 + f, st["ln2g"][l], st["ln2b"][l])
    return x[:, TARGET_TOKEN_IDX, :]


if __name__ == "__main__":
    key = jax.random.PRNGKey(0)
    k_param, k_ids = jax.random.split(key)
    params = init_params(k_param)

    input_ids = jax.random.randint(k_ids, (B, S), 0, VOCAB, dtype=jnp.int32)
    lengths = jnp.array([S, 5], dtype=jnp.int32)                 # second row padded
    attention_mask = (jnp.arange(S)[None, :] < lengths[:, None]).astype(jnp.int32)

    out = jax.block_until_ready(
        text_encoder_forward(input_ids, attention_mask, params))
    assert out.shape == (B, H) and out.dtype == jnp.float32

    ref = jax.block_until_ready(_ref_forward(input_ids, attention_mask, params))
    # tolerance covers bf16 matmul operands + EUP approximate-reciprocal softmax
    assert jnp.allclose(out, ref, rtol=2e-2, atol=2e-2), "mismatch vs reference"

    print("KERNEL_OK")
</pallas_src>

<mosaic_0001>
module attributes {stable_mosaic.version = 11 : i64} {
  func.func @encoder_layer_kernel(%arg0: i32, %arg1: i32, %arg2: memref<16x32xf32, #tpu.memory_space<vmem>>, %arg3: memref<2x8xf32, #tpu.memory_space<vmem>>, %arg4: memref<1x32x96xbf16, #tpu.memory_space<vmem>>, %arg5: memref<1x1x96xf32, #tpu.memory_space<vmem>>, %arg6: memref<1x32x32xbf16, #tpu.memory_space<vmem>>, %arg7: memref<1x1x32xf32, #tpu.memory_space<vmem>>, %arg8: memref<1x1x32xf32, #tpu.memory_space<vmem>>, %arg9: memref<1x1x32xf32, #tpu.memory_space<vmem>>, %arg10: memref<1x32x64xbf16, #tpu.memory_space<vmem>>, %arg11: memref<1x1x64xf32, #tpu.memory_space<vmem>>, %arg12: memref<1x64x32xbf16, #tpu.memory_space<vmem>>, %arg13: memref<1x1x32xf32, #tpu.memory_space<vmem>>, %arg14: memref<1x1x32xf32, #tpu.memory_space<vmem>>, %arg15: memref<1x1x32xf32, #tpu.memory_space<vmem>>, %arg16: memref<2x32xf32, #tpu.memory_space<vmem>>, %arg17: memref<16x32xf32, #tpu.memory_space<vmem>>) attributes {dimension_semantics = [#tpu.dimension_semantics<parallel>, #tpu.dimension_semantics<arbitrary>], iteration_bounds = array<i64: 1, 2>, scalar_prefetch = 0 : i64, scratch_operands = 1 : i64, tpu.core_type = #tpu.core_type<tc>, window_params = [{transform_indices = @transform_0, window_bounds = array<i64: 16, 32>}, {transform_indices = @transform_1, window_bounds = array<i64: 2, 8>}, {transform_indices = @transform_2, window_bounds = array<i64: 1, 32, 96>}, {transform_indices = @transform_3, window_bounds = array<i64: 1, 1, 96>}, {transform_indices = @transform_4, window_bounds = array<i64: 1, 32, 32>}, {transform_indices = @transform_5, window_bounds = array<i64: 1, 1, 32>}, {transform_indices = @transform_6, window_bounds = array<i64: 1, 1, 32>}, {transform_indices = @transform_7, window_bounds = array<i64: 1, 1, 32>}, {transform_indices = @transform_8, window_bounds = array<i64: 1, 32, 64>}, {transform_indices = @transform_9, window_bounds = array<i64: 1, 1, 64>}, {transform_indices = @transform_10, window_bounds = array<i64: 1, 64, 32>}, {transform_indices = @transform_11, window_bounds = array<i64: 1, 1, 32>}, {transform_indices = @transform_12, window_bounds = array<i64: 1, 1, 32>}, {transform_indices = @transform_13, window_bounds = array<i64: 1, 1, 32>}, {transform_indices = @transform_14, window_bounds = array<i64: 2, 32>}]} {
    %c0_i32 = arith.constant 0 : i32
    %0 = arith.cmpi eq, %arg1, %c0_i32 : i32
    %1 = arith.extui %0 : i1 to i32
    %c0_i32_0 = arith.constant 0 : i32
    %2 = arith.cmpi ne, %1, %c0_i32_0 : i32
    scf.if %2 {
      %c0_24 = arith.constant 0 : index
      %c0_25 = arith.constant 0 : index
      %71 = vector.load %arg2[%c0_24, %c0_25] : memref<16x32xf32, #tpu.memory_space<vmem>>, vector<16x32xf32>
      %c0_26 = arith.constant 0 : index
      %c0_27 = arith.constant 0 : index
      %72 = vector.load %arg17[%c0_26, %c0_27] : memref<16x32xf32, #tpu.memory_space<vmem>>, vector<16x32xf32>
      tpu.vector_store %arg17[%c0_26, %c0_27], %71 {strides = array<i32>} : memref<16x32xf32, #tpu.memory_space<vmem>>, vector<16x32xf32>,
    } else {
    }
    %c0 = arith.constant 0 : index
    %c0_1 = arith.constant 0 : index
    %3 = vector.load %arg17[%c0, %c0_1] : memref<16x32xf32, #tpu.memory_space<vmem>>, vector<16x32xf32>
    %c0_2 = arith.constant 0 : index
    %c0_3 = arith.constant 0 : index
    %4 = vector.load %arg3[%c0_2, %c0_3] : memref<2x8xf32, #tpu.memory_space<vmem>>, vector<2x8xf32>
    %5 = arith.truncf %3 : vector<16x32xf32> to vector<16x32xbf16>
    %c0_4 = arith.constant 0 : index
    %c0_5 = arith.constant 0 : index
    %c0_6 = arith.constant 0 : index
    %6 = vector.load %arg4[%c0_4, %c0_5, %c0_6] : memref<1x32x96xbf16, #tpu.memory_space<vmem>>, vector<1x32x96xbf16>
    %7 = vector.shape_cast %6 : vector<1x32x96xbf16> to vector<32x96xbf16>
    %cst = arith.constant dense<0.000000e+00> : vector<16x96xf32>
    %8 = tpu.matmul %5, %7, %cst {dimension_numbers = #tpu.dot_dimension_numbers<[1], [0], [0], [1], [0, 0, 1, 1], [], []>} : vector<16x32xbf16>, vector<32x96xbf16>, vector<16x96xf32> -> vector<16x96xf32>
    %c0_7 = arith.constant 0 : index
    %c0_8 = arith.constant 0 : index
    %c0_9 = arith.constant 0 : index
    %9 = vector.load %arg5[%c0_7, %c0_8, %c0_9] : memref<1x1x96xf32, #tpu.memory_space<vmem>>, vector<1x1x96xf32>
    %10 = vector.shape_cast %9 : vector<1x1x96xf32> to vector<1x96xf32>
    %11 = vector.broadcast %10 : vector<1x96xf32> to vector<16x96xf32>
    %12 = arith.addf %8, %11 : vector<16x96xf32>
    %13 = vector.extract_strided_slice %12 {offsets = [0, 0], sizes = [16, 16], strides = [1, 1]} : vector<16x96xf32> to vector<16x16xf32>
    %14 = vector.shape_cast %13 : vector<16x16xf32> to vector<2x8x16xf32>
    %15 = vector.extract_strided_slice %12 {offsets = [0, 32], sizes = [16, 16], strides = [1, 1]} : vector<16x96xf32> to vector<16x16xf32>
    %16 = vector.shape_cast %15 : vector<16x16xf32> to vector<2x8x16xf32>
    %17 = vector.extract_strided_slice %12 {offsets = [0, 64], sizes = [16, 16], strides = [1, 1]} : vector<16x96xf32> to vector<16x16xf32>
    %18 = vector.shape_cast %17 : vector<16x16xf32> to vector<2x8x16xf32>
    %19 = arith.truncf %14 : vector<2x8x16xf32> to vector<2x8x16xbf16>
    %20 = arith.truncf %16 : vector<2x8x16xf32> to vector<2x8x16xbf16>
    "tpu.trace_start"() <{level = 10 : i32, message = "bqd,bkd->bqk"}> : () -> ()
    %cst_10 = arith.constant dense<0.000000e+00> : vector<2x8x8xf32>
    %21 = tpu.matmul %19, %20, %cst_10 {dimension_numbers = #tpu.dot_dimension_numbers<[2], [2], [1], [1], [0, 0, 0, 1, 1, 1], [0], [0]>} : vector<2x8x16xbf16>, vector<2x8x16xbf16>, vector<2x8x8xf32> -> vector<2x8x8xf32>
    "tpu.trace_stop"() : () -> ()
    %22 = vector.shape_cast %4 : vector<2x8xf32> to vector<2x1x8xf32>
    %23 = vector.broadcast %22 : vector<2x1x8xf32> to vector<2x8x8xf32>
    %24 = arith.addf %21, %23 : vector<2x8x8xf32>
    %cst_11 = arith.constant dense<0xFF800000> : vector<2x8xf32>
    %25 = vector.multi_reduction <maximumf>, %24, %cst_11 [2] : vector<2x8x8xf32> to vector<2x8xf32>
    %26 = vector.shape_cast %25 : vector<2x8xf32> to vector<2x8x1xf32>
    %27 = vector.broadcast %26 : vector<2x8x1xf32> to vector<2x8x8xf32>
    %28 = arith.subf %24, %27 : vector<2x8x8xf32>
    %29 = math.exp %28 : vector<2x8x8xf32>
    %cst_12 = arith.constant dense<0.000000e+00> : vector<2x8xf32>
    %30 = vector.multi_reduction <add>, %29, %cst_12 [2] : vector<2x8x8xf32> to vector<2x8xf32>
    %31 = vector.shape_cast %30 : vector<2x8xf32> to vector<2x8x1xf32>
    %32 = tpu.reciprocal %31 {approx = true} : vector<2x8x1xf32> -> vector<2x8x1xf32>
    %33 = vector.broadcast %32 : vector<2x8x1xf32> to vector<2x8x8xf32>
    %34 = arith.mulf %29, %33 : vector<2x8x8xf32>
    %35 = arith.truncf %34 : vector<2x8x8xf32> to vector<2x8x8xbf16>
    %36 = arith.truncf %18 : vector<2x8x16xf32> to vector<2x8x16xbf16>
    "tpu.trace_start"() <{level = 10 : i32, message = "bqk,bkd->bqd"}> : () -> ()
    %cst_13 = arith.constant dense<0.000000e+00> : vector<2x8x16xf32>
    %37 = tpu.matmul %35, %36, %cst_13 {dimension_numbers = #tpu.dot_dimension_numbers<[2], [1], [1], [2], [0, 0, 0, 1, 1, 2], [0], [0]>} : vector<2x8x8xbf16>, vector<2x8x16xbf16>, vector<2x8x16xf32> -> vector<2x8x16xf32>
    "tpu.trace_stop"() : () -> ()
    %38 = vector.extract_strided_slice %12 {offsets = [0, 16], sizes = [16, 16], strides = [1, 1]} : vector<16x96xf32> to vector<16x16xf32>
    %39 = vector.shape_cast %38 : vector<16x16xf32> to vector<2x8x16xf32>
    %40 = vector.extract_strided_slice %12 {offsets = [0, 48], sizes = [16, 16], strides = [1, 1]} : vector<16x96xf32> to vector<16x16xf32>
    %41 = vector.shape_cast %40 : vector<16x16xf32> to vector<2x8x16xf32>
    %42 = vector.extract_strided_slice %12 {offsets = [0, 80], sizes = [16, 16], strides = [1, 1]} : vector<16x96xf32> to vector<16x16xf32>
    %43 = vector.shape_cast %42 : vector<16x16xf32> to vector<2x8x16xf32>
    %44 = arith.truncf %39 : vector<2x8x16xf32> to vector<2x8x16xbf16>
    %45 = arith.truncf %41 : vector<2x8x16xf32> to vector<2x8x16xbf16>
    "tpu.trace_start"() <{level = 10 : i32, message = "bqd,bkd->bqk"}> : () -> ()
    %cst_14 = arith.constant dense<0.000000e+00> : vector<2x8x8xf32>
    %46 = tpu.matmul %44, %45, %cst_14 {dimension_numbers = #tpu.dot_dimension_numbers<[2], [2], [1], [1], [0, 0, 0, 1, 1, 1], [0], [0]>} : vector<2x8x16xbf16>, vector<2x8x16xbf16>, vector<2x8x8xf32> -> vector<2x8x8xf32>
    "tpu.trace_stop"() : () -> ()
    %47 = vector.shape_cast %4 : vector<2x8xf32> to vector<2x1x8xf32>
    %48 = vector.broadcast %47 : vector<2x1x8xf32> to vector<2x8x8xf32>
    %49 = arith.addf %46, %48 : vector<2x8x8xf32>
    %cst_15 = arith.constant dense<0xFF800000> : vector<2x8xf32>
    %50 = vector.multi_reduction <maximumf>, %49, %cst_15 [2] : vector<2x8x8xf32> to vector<2x8xf32>
    %51 = vector.shape_cast %50 : vector<2x8xf32> to vector<2x8x1xf32>
    %52 = vector.broadcast %51 : vector<2x8x1xf32> to vector<2x8x8xf32>
    %53 = arith.subf %49, %52 : vector<2x8x8xf32>
    %54 = math.exp %53 : vector<2x8x8xf32>
    %cst_16 = arith.constant dense<0.000000e+00> : vector<2x8xf32>
    %55 = vector.multi_reduction <add>, %54, %cst_16 [2] : vector<2x8x8xf32> to vector<2x8xf32>
    %56 = vector.shape_cast %55 : vector<2x8xf32> to vector<2x8x1xf32>
    %57 = tpu.reciprocal %56 {approx = true} : vector<2x8x1xf32> -> vector<2x8x1xf32>
    %58 = vector.broadcast %57 : vector<2x8x1xf32> to vector<2x8x8xf32>
    %59 = arith.mulf %54, %58 : vector<2x8x8xf32>
    %60 = arith.truncf %59 : vector<2x8x8xf32> to vector<2x8x8xbf16>
    %61 = arith.truncf %43 : vector<2x8x16xf32> to vector<2x8x16xbf16>
    "tpu.trace_start"() <{level = 10 : i32, message = "bqk,bkd->bqd"}> : () -> ()
    %cst_17 = arith.constant dense<0.000000e+00> : vector<2x8x16xf32>
    %62 = tpu.matmul %60, %61, %cst_17 {dimension_numbers = #tpu.dot_dimension_numbers<[2], [1], [1], [2], [0, 0, 0, 1, 1, 2], [0], [0]>} : vector<2x8x8xbf16>, vector<2x8x16xbf16>, vector<2x8x16xf32> -> vector<2x8x16xf32>
    "tpu.trace_stop"() : () -> ()
    %c0_18 = arith.constant 0 : index
    %c0_19 = arith.constant 0 : index
    %c0_20 = arith.constant 0 : index
    %63 = vector.load %arg6[%c0_18, %c0_19, %c0_20] : memref<1x32x32xbf16, #tpu.memory_space<vmem>>, vector<1x32x32xbf16>
    %64 = vector.shape_cast %63 : vector<1x32x32xbf16> to vector<32x32xbf16>
    %c1_i32 = arith.constant 1 : i32
    %65 = arith.cmpi slt, %arg1, %c1_i32 : i32
    %66 = arith.extui %65 : i1 to i32
    %c0_i32_21 = arith.constant 0 : i32
    %67 = arith.cmpi ne, %66, %c0_i32_21 : i32
    scf.if %67 {
      %c0_24 = arith.constant 0 : index
      %c0_25 = arith.constant 0 : index
      %c0_26 = arith.constant 0 : index
      %71 = vector.load %arg7[%c0_24, %c0_25, %c0_26] : memref<1x1x32xf32, #tpu.memory_space<vmem>>, vector<1x1x32xf32>
      %72 = vector.shape_cast %71 : vector<1x1x32xf32> to vector<1x32xf32>
      %73 = vector.shape_cast %37 : vector<2x8x16xf32> to vector<16x16xf32>
      %74 = arith.truncf %73 : vector<16x16xf32> to vector<16x16xbf16>
      %75 = vector.extract_strided_slice %64 {offsets = [0, 0], sizes = [16, 32], strides = [1, 1]} : vector<32x32xbf16> to vector<16x32xbf16>
      %cst_27 = arith.constant dense<0.000000e+00> : vector<16x32xf32>
      %76 = tpu.matmul %74, %75, %cst_27 {dimension_numbers = #tpu.dot_dimension_numbers<[1], [0], [0], [1], [0, 0, 1, 1], [], []>} : vector<16x16xbf16>, vector<16x32xbf16>, vector<16x32xf32> -> vector<16x32xf32>
      %cst_28 = arith.constant 0.000000e+00 : f32
      %77 = vector.broadcast %cst_28 : f32 to vector<16x32xf32>
      %78 = arith.addf %77, %76 : vector<16x32xf32>
      %79 = vector.shape_cast %62 : vector<2x8x16xf32> to vector<16x16xf32>
      %80 = arith.truncf %79 : vector<16x16xf32> to vector<16x16xbf16>
      %81 = vector.extract_strided_slice %64 {offsets = [16, 0], sizes = [16, 32], strides = [1, 1]} : vector<32x32xbf16> to vector<16x32xbf16>
      %cst_29 = arith.constant dense<0.000000e+00> : vector<16x32xf32>
      %82 = tpu.matmul %80, %81, %cst_29 {dimension_numbers = #tpu.dot_dimension_numbers<[1], [0], [0], [1], [0, 0, 1, 1], [], []>} : vector<16x16xbf16>, vector<16x32xbf16>, vector<16x32xf32> -> vector<16x32xf32>
      %83 = arith.addf %78, %82 : vector<16x32xf32>
      %84 = vector.broadcast %72 : vector<1x32xf32> to vector<16x32xf32>
      %85 = arith.addf %84, %83 : vector<16x32xf32>
      %86 = arith.addf %3, %85 : vector<16x32xf32>
      %c0_30 = arith.constant 0 : index
      %c0_31 = arith.constant 0 : index
      %c0_32 = arith.constant 0 : index
      %87 = vector.load %arg8[%c0_30, %c0_31, %c0_32] : memref<1x1x32xf32, #tpu.memory_space<vmem>>, vector<1x1x32xf32>
      %88 = vector.shape_cast %87 : vector<1x1x32xf32> to vector<1x32xf32>
      %c0_33 = arith.constant 0 : index
      %c0_34 = arith.constant 0 : index
      %c0_35 = arith.constant 0 : index
      %89 = vector.load %arg9[%c0_33, %c0_34, %c0_35] : memref<1x1x32xf32, #tpu.memory_space<vmem>>, vector<1x1x32xf32>
      %90 = vector.shape_cast %89 : vector<1x1x32xf32> to vector<1x32xf32>
      %cst_36 = arith.constant dense<0.000000e+00> : vector<16xf32>
      %91 = vector.multi_reduction <add>, %86, %cst_36 [1] : vector<16x32xf32> to vector<16xf32>
      %92 = vector.shape_cast %91 : vector<16xf32> to vector<16x1xf32>
      %cst_37 = arith.constant 3.200000e+01 : f32
      %93 = vector.broadcast %cst_37 : f32 to vector<16x1xf32>
      %94 = arith.divf %92, %93 : vector<16x1xf32>
      %95 = vector.broadcast %94 : vector<16x1xf32> to vector<16x32xf32>
      %96 = arith.subf %86, %95 : vector<16x32xf32>
      %97 = arith.mulf %96, %96 : vector<16x32xf32>
      %cst_38 = arith.constant dense<0.000000e+00> : vector<16xf32>
      %98 = vector.multi_reduction <add>, %97, %cst_38 [1] : vector<16x32xf32> to vector<16xf32>
      %99 = vector.shape_cast %98 : vector<16xf32> to vector<16x1xf32>
      %cst_39 = arith.constant 3.200000e+01 : f32
      %100 = vector.broadcast %cst_39 : f32 to vector<16x1xf32>
      %101 = arith.divf %99, %100 : vector<16x1xf32>
      %102 = vector.broadcast %94 : vector<16x1xf32> to vector<16x32xf32>
      %103 = arith.subf %86, %102 : vector<16x32xf32>
      %cst_40 = arith.constant 9.99999996E-13 : f32
      %104 = vector.broadcast %cst_40 : f32 to vector<16x1xf32>
      %105 = arith.addf %101, %104 : vector<16x1xf32>
      %106 = math.rsqrt %105 : vector<16x1xf32>
      %107 = vector.broadcast %106 : vector<16x1xf32> to vector<16x32xf32>
      %108 = arith.mulf %103, %107 : vector<16x32xf32>
      %109 = vector.broadcast %88 : vector<1x32xf32> to vector<16x32xf32>
      %110 = arith.mulf %108, %109 : vector<16x32xf32>
      %111 = vector.broadcast %90 : vector<1x32xf32> to vector<16x32xf32>
      %112 = arith.addf %110, %111 : vector<16x32xf32>
      %113 = arith.truncf %112 : vector<16x32xf32> to vector<16x32xbf16>
      %c0_41 = arith.constant 0 : index
      %c0_42 = arith.constant 0 : index
      %c0_43 = arith.constant 0 : index
      %114 = vector.load %arg10[%c0_41, %c0_42, %c0_43] : memref<1x32x64xbf16, #tpu.memory_space<vmem>>, vector<1x32x64xbf16>
      %115 = vector.shape_cast %114 : vector<1x32x64xbf16> to vector<32x64xbf16>
      %cst_44 = arith.constant dense<0.000000e+00> : vector<16x64xf32>
      %116 = tpu.matmul %113, %115, %cst_44 {dimension_numbers = #tpu.dot_dimension_numbers<[1], [0], [0], [1], [0, 0, 1, 1], [], []>} : vector<16x32xbf16>, vector<32x64xbf16>, vector<16x64xf32> -> vector<16x64xf32>
      %c0_45 = arith.constant 0 : index
      %c0_46 = arith.constant 0 : index
      %c0_47 = arith.constant 0 : index
      %117 = vector.load %arg11[%c0_45, %c0_46, %c0_47] : memref<1x1x64xf32, #tpu.memory_space<vmem>>, vector<1x1x64xf32>
      %118 = vector.shape_cast %117 : vector<1x1x64xf32> to vector<1x64xf32>
      %119 = vector.broadcast %118 : vector<1x64xf32> to vector<16x64xf32>
      %120 = arith.addf %116, %119 : vector<16x64xf32>
      %cst_48 = arith.constant 5.000000e-01 : f32
      %121 = vector.broadcast %cst_48 : f32 to vector<16x64xf32>
      %122 = arith.mulf %121, %120 : vector<16x64xf32>
      %cst_49 = arith.constant 0.707106769 : f32
      %123 = vector.broadcast %cst_49 : f32 to vector<16x64xf32>
      %124 = arith.mulf %120, %123 : vector<16x64xf32>
      %125 = math.absf %124 : vector<16x64xf32>
      %cst_50 = arith.constant 0.327591091 : f32
      %126 = vector.broadcast %cst_50 : f32 to vector<16x64xf32>
      %127 = arith.mulf %126, %125 : vector<16x64xf32>
      %cst_51 = arith.constant 1.000000e+00 : f32
      %128 = vector.broadcast %cst_51 : f32 to vector<16x64xf32>
      %129 = arith.addf %128, %127 : vector<16x64xf32>
      %cst_52 = arith.constant 1.000000e+00 : f32
      %130 = vector.broadcast %cst_52 : f32 to vector<16x64xf32>
      %131 = arith.divf %130, %129 : vector<16x64xf32>
      %cst_53 = arith.constant 1.06140542 : f32
      %132 = vector.broadcast %cst_53 : f32 to vector<16x64xf32>
      %133 = arith.mulf %132, %131 : vector<16x64xf32>
      %cst_54 = arith.constant -1.45315206 : f32
      %134 = vector.broadcast %cst_54 : f32 to vector<16x64xf32>
      %135 = arith.addf %133, %134 : vector<16x64xf32>
      %136 = arith.mulf %135, %131 : vector<16x64xf32>
      %cst_55 = arith.constant 1.42141378 : f32
      %137 = vector.broadcast %cst_55 : f32 to vector<16x64xf32>
      %138 = arith.addf %136, %137 : vector<16x64xf32>
      %139 = arith.mulf %138, %131 : vector<16x64xf32>
      %cst_56 = arith.constant -0.284496725 : f32
      %140 = vector.broadcast %cst_56 : f32 to vector<16x64xf32>
      %141 = arith.addf %139, %140 : vector<16x64xf32>
      %142 = arith.mulf %141, %131 : vector<16x64xf32>
      %cst_57 = arith.constant 0.254829586 : f32
      %143 = vector.broadcast %cst_57 : f32 to vector<16x64xf32>
      %144 = arith.addf %142, %143 : vector<16x64xf32>
      %145 = arith.mulf %144, %131 : vector<16x64xf32>
      %cst_58 = arith.constant 0.000000e+00 : f32
      %146 = vector.broadcast %cst_58 : f32 to vector<16x64xf32>
      %147 = arith.subf %146, %125 : vector<16x64xf32>
      %148 = arith.mulf %147, %125 : vector<16x64xf32>
      %149 = math.exp %148 : vector<16x64xf32>
      %150 = arith.mulf %145, %149 : vector<16x64xf32>
      %cst_59 = arith.constant 1.000000e+00 : f32
      %151 = vector.broadcast %cst_59 : f32 to vector<16x64xf32>
      %152 = arith.subf %151, %150 : vector<16x64xf32>
      %cst_60 = arith.constant 0.000000e+00 : f32
      %153 = vector.broadcast %cst_60 : f32 to vector<16x64xf32>
      %154 = arith.cmpf oge, %124, %153 : vector<16x64xf32>
      %cst_61 = arith.constant 0.000000e+00 : f32
      %155 = vector.broadcast %cst_61 : f32 to vector<16x64xf32>
      %156 = arith.subf %155, %152 : vector<16x64xf32>
      %157 = arith.select %154, %152, %156 : vector<16x64xi1>, vector<16x64xf32>
      %cst_62 = arith.constant 1.000000e+00 : f32
      %158 = vector.broadcast %cst_62 : f32 to vector<16x64xf32>
      %159 = arith.addf %158, %157 : vector<16x64xf32>
      %160 = arith.mulf %122, %159 : vector<16x64xf32>
      %161 = arith.truncf %160 : vector<16x64xf32> to vector<16x64xbf16>
      %c0_63 = arith.constant 0 : index
      %c0_64 = arith.constant 0 : index
      %c0_65 = arith.constant 0 : index
      %162 = vector.load %arg12[%c0_63, %c0_64, %c0_65] : memref<1x64x32xbf16, #tpu.memory_space<vmem>>, vector<1x64x32xbf16>
      %163 = vector.shape_cast %162 : vector<1x64x32xbf16> to vector<64x32xbf16>
      %cst_66 = arith.constant dense<0.000000e+00> : vector<16x32xf32>
      %164 = tpu.matmul %161, %163, %cst_66 {dimension_numbers = #tpu.dot_dimension_numbers<[1], [0], [0], [1], [0, 0, 1, 1], [], []>} : vector<16x64xbf16>, vector<64x32xbf16>, vector<16x32xf32> -> vector<16x32xf32>
      %c0_67 = arith.constant 0 : index
      %c0_68 = arith.constant 0 : index
      %c0_69 = arith.constant 0 : index
      %165 = vector.load %arg13[%c0_67, %c0_68, %c0_69] : memref<1x1x32xf32, #tpu.memory_space<vmem>>, vector<1x1x32xf32>
      %166 = vector.shape_cast %165 : vector<1x1x32xf32> to vector<1x32xf32>
      %167 = vector.broadcast %166 : vector<1x32xf32> to vector<16x32xf32>
      %168 = arith.addf %164, %167 : vector<16x32xf32>
      %169 = arith.addf %112, %168 : vector<16x32xf32>
      %c0_70 = arith.constant 0 : index
      %c0_71 = arith.constant 0 : index
      %c0_72 = arith.constant 0 : index
      %170 = vector.load %arg14[%c0_70, %c0_71, %c0_72] : memref<1x1x32xf32, #tpu.memory_space<vmem>>, vector<1x1x32xf32>
      %171 = vector.shape_cast %170 : vector<1x1x32xf32> to vector<1x32xf32>
      %c0_73 = arith.constant 0 : index
      %c0_74 = arith.constant 0 : index
      %c0_75 = arith.constant 0 : index
      %172 = vector.load %arg15[%c0_73, %c0_74, %c0_75] : memref<1x1x32xf32, #tpu.memory_space<vmem>>, vector<1x1x32xf32>
      %173 = vector.shape_cast %172 : vector<1x1x32xf32> to vector<1x32xf32>
      %cst_76 = arith.constant dense<0.000000e+00> : vector<16xf32>
      %174 = vector.multi_reduction <add>, %169, %cst_76 [1] : vector<16x32xf32> to vector<16xf32>
      %175 = vector.shape_cast %174 : vector<16xf32> to vector<16x1xf32>
      %cst_77 = arith.constant 3.200000e+01 : f32
      %176 = vector.broadcast %cst_77 : f32 to vector<16x1xf32>
      %177 = arith.divf %175, %176 : vector<16x1xf32>
      %178 = vector.broadcast %177 : vector<16x1xf32> to vector<16x32xf32>
      %179 = arith.subf %169, %178 : vector<16x32xf32>
      %180 = arith.mulf %179, %179 : vector<16x32xf32>
      %cst_78 = arith.constant dense<0.000000e+00> : vector<16xf32>
      %181 = vector.multi_reduction <add>, %180, %cst_78 [1] : vector<16x32xf32> to vector<16xf32>
      %182 = vector.shape_cast %181 : vector<16xf32> to vector<16x1xf32>
      %cst_79 = arith.constant 3.200000e+01 : f32
      %183 = vector.broadcast %cst_79 : f32 to vector<16x1xf32>
      %184 = arith.divf %182, %183 : vector<16x1xf32>
      %185 = vector.broadcast %177 : vector<16x1xf32> to vector<16x32xf32>
      %186 = arith.subf %169, %185 : vector<16x32xf32>
      %cst_80 = arith.constant 9.99999996E-13 : f32
      %187 = vector.broadcast %cst_80 : f32 to vector<16x1xf32>
      %188 = arith.addf %184, %187 : vector<16x1xf32>
      %189 = math.rsqrt %188 : vector<16x1xf32>
      %190 = vector.broadcast %189 : vector<16x1xf32> to vector<16x32xf32>
      %191 = arith.mulf %186, %190 : vector<16x32xf32>
      %192 = vector.broadcast %171 : vector<1x32xf32> to vector<16x32xf32>
      %193 = arith.mulf %191, %192 : vector<16x32xf32>
      %194 = vector.broadcast %173 : vector<1x32xf32> to vector<16x32xf32>
      %195 = arith.addf %193, %194 : vector<16x32xf32>
      %c0_81 = arith.constant 0 : index
      %c0_82 = arith.constant 0 : index
      %196 = vector.load %arg17[%c0_81, %c0_82] : memref<16x32xf32, #tpu.memory_space<vmem>>, vector<16x32xf32>
      tpu.vector_store %arg17[%c0_81, %c0_82], %195 {strides = array<i32>} : memref<16x32xf32, #tpu.memory_space<vmem>>, vector<16x32xf32>,
    } else {
    }
    %c1_i32_22 = arith.constant 1 : i32
    %68 = arith.cmpi eq, %arg1, %c1_i32_22 : i32
    %69 = arith.extui %68 : i1 to i32
    %c0_i32_23 = arith.constant 0 : i32
    %70 = arith.cmpi ne, %69, %c0_i32_23 : i32
    scf.if %70 {
      %c0_24 = arith.constant 0 : index
      %c0_25 = arith.constant 0 : index
      %c0_26 = arith.constant 0 : index
      %71 = vector.load %arg7[%c0_24, %c0_25, %c0_26] : memref<1x1x32xf32, #tpu.memory_space<vmem>>, vector<1x1x32xf32>
      %72 = vector.shape_cast %71 : vector<1x1x32xf32> to vector<1x32xf32>
      %73 = vector.extract_strided_slice %37 {offsets = [0, 0, 0], sizes = [2, 1, 16], strides = [1, 1, 1]} : vector<2x8x16xf32> to vector<2x1x16xf32>
      %74 = vector.shape_cast %73 : vector<2x1x16xf32> to vector<2x16xf32>
      %75 = arith.truncf %74 : vector<2x16xf32> to vector<2x16xbf16>
      %76 = vector.extract_strided_slice %64 {offsets = [0, 0], sizes = [16, 32], strides = [1, 1]} : vector<32x32xbf16> to vector<16x32xbf16>
      %cst_27 = arith.constant dense<0.000000e+00> : vector<2x32xf32>
      %77 = tpu.matmul %75, %76, %cst_27 {dimension_numbers = #tpu.dot_dimension_numbers<[1], [0], [0], [1], [0, 0, 1, 1], [], []>} : vector<2x16xbf16>, vector<16x32xbf16>, vector<2x32xf32> -> vector<2x32xf32>
      %cst_28 = arith.constant 0.000000e+00 : f32
      %78 = vector.broadcast %cst_28 : f32 to vector<2x32xf32>
      %79 = arith.addf %78, %77 : vector<2x32xf32>
      %80 = vector.extract_strided_slice %62 {offsets = [0, 0, 0], sizes = [2, 1, 16], strides = [1, 1, 1]} : vector<2x8x16xf32> to vector<2x1x16xf32>
      %81 = vector.shape_cast %80 : vector<2x1x16xf32> to vector<2x16xf32>
      %82 = arith.truncf %81 : vector<2x16xf32> to vector<2x16xbf16>
      %83 = vector.extract_strided_slice %64 {offsets = [16, 0], sizes = [16, 32], strides = [1, 1]} : vector<32x32xbf16> to vector<16x32xbf16>
      %cst_29 = arith.constant dense<0.000000e+00> : vector<2x32xf32>
      %84 = tpu.matmul %82, %83, %cst_29 {dimension_numbers = #tpu.dot_dimension_numbers<[1], [0], [0], [1], [0, 0, 1, 1], [], []>} : vector<2x16xbf16>, vector<16x32xbf16>, vector<2x32xf32> -> vector<2x32xf32>
      %85 = arith.addf %79, %84 : vector<2x32xf32>
      %86 = vector.broadcast %72 : vector<1x32xf32> to vector<2x32xf32>
      %87 = arith.addf %86, %85 : vector<2x32xf32>
      %88 = vector.shape_cast %3 : vector<16x32xf32> to vector<2x8x32xf32>
      %89 = vector.extract_strided_slice %88 {offsets = [0, 0, 0], sizes = [2, 1, 32], strides = [1, 1, 1]} : vector<2x8x32xf32> to vector<2x1x32xf32>
      %90 = vector.shape_cast %89 : vector<2x1x32xf32> to vector<2x32xf32>
      %91 = arith.addf %90, %87 : vector<2x32xf32>
      %c0_30 = arith.constant 0 : index
      %c0_31 = arith.constant 0 : index
      %c0_32 = arith.constant 0 : index
      %92 = vector.load %arg8[%c0_30, %c0_31, %c0_32] : memref<1x1x32xf32, #tpu.memory_space<vmem>>, vector<1x1x32xf32>
      %93 = vector.shape_cast %92 : vector<1x1x32xf32> to vector<1x32xf32>
      %c0_33 = arith.constant 0 : index
      %c0_34 = arith.constant 0 : index
      %c0_35 = arith.constant 0 : index
      %94 = vector.load %arg9[%c0_33, %c0_34, %c0_35] : memref<1x1x32xf32, #tpu.memory_space<vmem>>, vector<1x1x32xf32>
      %95 = vector.shape_cast %94 : vector<1x1x32xf32> to vector<1x32xf32>
      %cst_36 = arith.constant dense<0.000000e+00> : vector<2xf32>
      %96 = vector.multi_reduction <add>, %91, %cst_36 [1] : vector<2x32xf32> to vector<2xf32>
      %97 = vector.shape_cast %96 : vector<2xf32> to vector<2x1xf32>
      %cst_37 = arith.constant 3.200000e+01 : f32
      %98 = vector.broadcast %cst_37 : f32 to vector<2x1xf32>
      %99 = arith.divf %97, %98 : vector<2x1xf32>
      %100 = vector.broadcast %99 : vector<2x1xf32> to vector<2x32xf32>
      %101 = arith.subf %91, %100 : vector<2x32xf32>
      %102 = arith.mulf %101, %101 : vector<2x32xf32>
      %cst_38 = arith.constant dense<0.000000e+00> : vector<2xf32>
      %103 = vector.multi_reduction <add>, %102, %cst_38 [1] : vector<2x32xf32> to vector<2xf32>
      %104 = vector.shape_cast %103 : vector<2xf32> to vector<2x1xf32>
      %cst_39 = arith.constant 3.200000e+01 : f32
      %105 = vector.broadcast %cst_39 : f32 to vector<2x1xf32>
      %106 = arith.divf %104, %105 : vector<2x1xf32>
      %107 = vector.broadcast %99 : vector<2x1xf32> to vector<2x32xf32>
      %108 = arith.subf %91, %107 : vector<2x32xf32>
      %cst_40 = arith.constant 9.99999996E-13 : f32
      %109 = vector.broadcast %cst_40 : f32 to vector<2x1xf32>
      %110 = arith.addf %106, %109 : vector<2x1xf32>
      %111 = math.rsqrt %110 : vector<2x1xf32>
      %112 = vector.broadcast %111 : vector<2x1xf32> to vector<2x32xf32>
      %113 = arith.mulf %108, %112 : vector<2x32xf32>
      %114 = vector.broadcast %93 : vector<1x32xf32> to vector<2x32xf32>
      %115 = arith.mulf %113, %114 : vector<2x32xf32>
      %116 = vector.broadcast %95 : vector<1x32xf32> to vector<2x32xf32>
      %117 = arith.addf %115, %116 : vector<2x32xf32>
      %118 = arith.truncf %117 : vector<2x32xf32> to vector<2x32xbf16>
      %c0_41 = arith.constant 0 : index
      %c0_42 = arith.constant 0 : index
      %c0_43 = arith.constant 0 : index
      %119 = vector.load %arg10[%c0_41, %c0_42, %c0_43] : memref<1x32x64xbf16, #tpu.memory_space<vmem>>, vector<1x32x64xbf16>
      %120 = vector.shape_cast %119 : vector<1x32x64xbf16> to vector<32x64xbf16>
      %cst_44 = arith.constant dense<0.000000e+00> : vector<2x64xf32>
      %121 = tpu.matmul %118, %120, %cst_44 {dimension_numbers = #tpu.dot_dimension_numbers<[1], [0], [0], [1], [0, 0, 1, 1], [], []>} : vector<2x32xbf16>, vector<32x64xbf16>, vector<2x64xf32> -> vector<2x64xf32>
      %c0_45 = arith.constant 0 : index
      %c0_46 = arith.constant 0 : index
      %c0_47 = arith.constant 0 : index
      %122 = vector.load %arg11[%c0_45, %c0_46, %c0_47] : memref<1x1x64xf32, #tpu.memory_space<vmem>>, vector<1x1x64xf32>
      %123 = vector.shape_cast %122 : vector<1x1x64xf32> to vector<1x64xf32>
      %124 = vector.broadcast %123 : vector<1x64xf32> to vector<2x64xf32>
      %125 = arith.addf %121, %124 : vector<2x64xf32>
      %cst_48 = arith.constant 5.000000e-01 : f32
      %126 = vector.broadcast %cst_48 : f32 to vector<2x64xf32>
      %127 = arith.mulf %126, %125 : vector<2x64xf32>
      %cst_49 = arith.constant 0.707106769 : f32
      %128 = vector.broadcast %cst_49 : f32 to vector<2x64xf32>
      %129 = arith.mulf %125, %128 : vector<2x64xf32>
      %130 = math.absf %129 : vector<2x64xf32>
      %cst_50 = arith.constant 0.327591091 : f32
      %131 = vector.broadcast %cst_50 : f32 to vector<2x64xf32>
      %132 = arith.mulf %131, %130 : vector<2x64xf32>
      %cst_51 = arith.constant 1.000000e+00 : f32
      %133 = vector.broadcast %cst_51 : f32 to vector<2x64xf32>
      %134 = arith.addf %133, %132 : vector<2x64xf32>
      %cst_52 = arith.constant 1.000000e+00 : f32
      %135 = vector.broadcast %cst_52 : f32 to vector<2x64xf32>
      %136 = arith.divf %135, %134 : vector<2x64xf32>
      %cst_53 = arith.constant 1.06140542 : f32
      %137 = vector.broadcast %cst_53 : f32 to vector<2x64xf32>
      %138 = arith.mulf %137, %136 : vector<2x64xf32>
      %cst_54 = arith.constant -1.45315206 : f32
      %139 = vector.broadcast %cst_54 : f32 to vector<2x64xf32>
      %140 = arith.addf %138, %139 : vector<2x64xf32>
      %141 = arith.mulf %140, %136 : vector<2x64xf32>
      %cst_55 = arith.constant 1.42141378 : f32
      %142 = vector.broadcast %cst_55 : f32 to vector<2x64xf32>
      %143 = arith.addf %141, %142 : vector<2x64xf32>
      %144 = arith.mulf %143, %136 : vector<2x64xf32>
      %cst_56 = arith.constant -0.284496725 : f32
      %145 = vector.broadcast %cst_56 : f32 to vector<2x64xf32>
      %146 = arith.addf %144, %145 : vector<2x64xf32>
      %147 = arith.mulf %146, %136 : vector<2x64xf32>
      %cst_57 = arith.constant 0.254829586 : f32
      %148 = vector.broadcast %cst_57 : f32 to vector<2x64xf32>
      %149 = arith.addf %147, %148 : vector<2x64xf32>
      %150 = arith.mulf %149, %136 : vector<2x64xf32>
      %cst_58 = arith.constant 0.000000e+00 : f32
      %151 = vector.broadcast %cst_58 : f32 to vector<2x64xf32>
      %152 = arith.subf %151, %130 : vector<2x64xf32>
      %153 = arith.mulf %152, %130 : vector<2x64xf32>
      %154 = math.exp %153 : vector<2x64xf32>
      %155 = arith.mulf %150, %154 : vector<2x64xf32>
      %cst_59 = arith.constant 1.000000e+00 : f32
      %156 = vector.broadcast %cst_59 : f32 to vector<2x64xf32>
      %157 = arith.subf %156, %155 : vector<2x64xf32>
      %cst_60 = arith.constant 0.000000e+00 : f32
      %158 = vector.broadcast %cst_60 : f32 to vector<2x64xf32>
      %159 = arith.cmpf oge, %129, %158 : vector<2x64xf32>
      %cst_61 = arith.constant 0.000000e+00 : f32
      %160 = vector.broadcast %cst_61 : f32 to vector<2x64xf32>
      %161 = arith.subf %160, %157 : vector<2x64xf32>
      %162 = arith.select %159, %157, %161 : vector<2x64xi1>, vector<2x64xf32>
      %cst_62 = arith.constant 1.000000e+00 : f32
      %163 = vector.broadcast %cst_62 : f32 to vector<2x64xf32>
      %164 = arith.addf %163, %162 : vector<2x64xf32>
      %165 = arith.mulf %127, %164 : vector<2x64xf32>
      %166 = arith.truncf %165 : vector<2x64xf32> to vector<2x64xbf16>
      %c0_63 = arith.constant 0 : index
      %c0_64 = arith.constant 0 : index
      %c0_65 = arith.constant 0 : index
      %167 = vector.load %arg12[%c0_63, %c0_64, %c0_65] : memref<1x64x32xbf16, #tpu.memory_space<vmem>>, vector<1x64x32xbf16>
      %168 = vector.shape_cast %167 : vector<1x64x32xbf16> to vector<64x32xbf16>
      %cst_66 = arith.constant dense<0.000000e+00> : vector<2x32xf32>
      %169 = tpu.matmul %166, %168, %cst_66 {dimension_numbers = #tpu.dot_dimension_numbers<[1], [0], [0], [1], [0, 0, 1, 1], [], []>} : vector<2x64xbf16>, vector<64x32xbf16>, vector<2x32xf32> -> vector<2x32xf32>
      %c0_67 = arith.constant 0 : index
      %c0_68 = arith.constant 0 : index
      %c0_69 = arith.constant 0 : index
      %170 = vector.load %arg13[%c0_67, %c0_68, %c0_69] : memref<1x1x32xf32, #tpu.memory_space<vmem>>, vector<1x1x32xf32>
      %171 = vector.shape_cast %170 : vector<1x1x32xf32> to vector<1x32xf32>
      %172 = vector.broadcast %171 : vector<1x32xf32> to vector<2x32xf32>
      %173 = arith.addf %169, %172 : vector<2x32xf32>
      %174 = arith.addf %117, %173 : vector<2x32xf32>
      %c0_70 = arith.constant 0 : index
      %c0_71 = arith.constant 0 : index
      %c0_72 = arith.constant 0 : index
      %175 = vector.load %arg14[%c0_70, %c0_71, %c0_72] : memref<1x1x32xf32, #tpu.memory_space<vmem>>, vector<1x1x32xf32>
      %176 = vector.shape_cast %175 : vector<1x1x32xf32> to vector<1x32xf32>
      %c0_73 = arith.constant 0 : index
      %c0_74 = arith.constant 0 : index
      %c0_75 = arith.constant 0 : index
      %177 = vector.load %arg15[%c0_73, %c0_74, %c0_75] : memref<1x1x32xf32, #tpu.memory_space<vmem>>, vector<1x1x32xf32>
      %178 = vector.shape_cast %177 : vector<1x1x32xf32> to vector<1x32xf32>
      %cst_76 = arith.constant dense<0.000000e+00> : vector<2xf32>
      %179 = vector.multi_reduction <add>, %174, %cst_76 [1] : vector<2x32xf32> to vector<2xf32>
      %180 = vector.shape_cast %179 : vector<2xf32> to vector<2x1xf32>
      %cst_77 = arith.constant 3.200000e+01 : f32
      %181 = vector.broadcast %cst_77 : f32 to vector<2x1xf32>
      %182 = arith.divf %180, %181 : vector<2x1xf32>
      %183 = vector.broadcast %182 : vector<2x1xf32> to vector<2x32xf32>
      %184 = arith.subf %174, %183 : vector<2x32xf32>
      %185 = arith.mulf %184, %184 : vector<2x32xf32>
      %cst_78 = arith.constant dense<0.000000e+00> : vector<2xf32>
      %186 = vector.multi_reduction <add>, %185, %cst_78 [1] : vector<2x32xf32> to vector<2xf32>
      %187 = vector.shape_cast %186 : vector<2xf32> to vector<2x1xf32>
      %cst_79 = arith.constant 3.200000e+01 : f32
      %188 = vector.broadcast %cst_79 : f32 to vector<2x1xf32>
      %189 = arith.divf %187, %188 : vector<2x1xf32>
      %190 = vector.broadcast %182 : vector<2x1xf32> to vector<2x32xf32>
      %191 = arith.subf %174, %190 : vector<2x32xf32>
      %cst_80 = arith.constant 9.99999996E-13 : f32
      %192 = vector.broadcast %cst_80 : f32 to vector<2x1xf32>
      %193 = arith.addf %189, %192 : vector<2x1xf32>
      %194 = math.rsqrt %193 : vector<2x1xf32>
      %195 = vector.broadcast %194 : vector<2x1xf32> to vector<2x32xf32>
      %196 = arith.mulf %191, %195 : vector<2x32xf32>
      %197 = vector.broadcast %176 : vector<1x32xf32> to vector<2x32xf32>
      %198 = arith.mulf %196, %197 : vector<2x32xf32>
      %199 = vector.broadcast %178 : vector<1x32xf32> to vector<2x32xf32>
      %200 = arith.addf %198, %199 : vector<2x32xf32>
      %c0_81 = arith.constant 0 : index
      %c0_82 = arith.constant 0 : index
      %201 = vector.load %arg16[%c0_81, %c0_82] : memref<2x32xf32, #tpu.memory_space<vmem>>, vector<2x32xf32>
      tpu.vector_store %arg16[%c0_81, %c0_82], %200 {strides = array<i32>} : memref<2x32xf32, #tpu.memory_space<vmem>>, vector<2x32xf32>,
    } else {
    }
    return
  }
  func.func @transform_0(%arg0: i32, %arg1: i32) -> (i32, i32) {
    %c0_i32 = arith.constant 0 : i32
    %c0_i32_0 = arith.constant 0 : i32
    return %arg0, %c0_i32 : i32, i32
  }
  func.func @transform_1(%arg0: i32, %arg1: i32) -> (i32, i32) {
    %c0_i32 = arith.constant 0 : i32
    %c0_i32_0 = arith.constant 0 : i32
    return %arg0, %c0_i32 : i32, i32
  }
  func.func @transform_2(%arg0: i32, %arg1: i32) -> (i32, i32, i32) {
    %c0_i32 = arith.constant 0 : i32
    %c0_i32_0 = arith.constant 0 : i32
    %c0_i32_1 = arith.constant 0 : i32
    return %arg1, %c0_i32, %c0_i32_0 : i32, i32, i32
  }
  func.func @transform_3(%arg0: i32, %arg1: i32) -> (i32, i32, i32) {
    %c0_i32 = arith.constant 0 : i32
    %c0_i32_0 = arith.constant 0 : i32
    %c0_i32_1 = arith.constant 0 : i32
    return %arg1, %c0_i32, %c0_i32_0 : i32, i32, i32
  }
  func.func @transform_4(%arg0: i32, %arg1: i32) -> (i32, i32, i32) {
    %c0_i32 = arith.constant 0 : i32
    %c0_i32_0 = arith.constant 0 : i32
    %c0_i32_1 = arith.constant 0 : i32
    return %arg1, %c0_i32, %c0_i32_0 : i32, i32, i32
  }
  func.func @transform_5(%arg0: i32, %arg1: i32) -> (i32, i32, i32) {
    %c0_i32 = arith.constant 0 : i32
    %c0_i32_0 = arith.constant 0 : i32
    %c0_i32_1 = arith.constant 0 : i32
    return %arg1, %c0_i32, %c0_i32_0 : i32, i32, i32
  }
  func.func @transform_6(%arg0: i32, %arg1: i32) -> (i32, i32, i32) {
    %c0_i32 = arith.constant 0 : i32
    %c0_i32_0 = arith.constant 0 : i32
    %c0_i32_1 = arith.constant 0 : i32
    return %arg1, %c0_i32, %c0_i32_0 : i32, i32, i32
  }
  func.func @transform_7(%arg0: i32, %arg1: i32) -> (i32, i32, i32) {
    %c0_i32 = arith.constant 0 : i32
    %c0_i32_0 = arith.constant 0 : i32
    %c0_i32_1 = arith.constant 0 : i32
    return %arg1, %c0_i32, %c0_i32_0 : i32, i32, i32
  }
  func.func @transform_8(%arg0: i32, %arg1: i32) -> (i32, i32, i32) {
    %c0_i32 = arith.constant 0 : i32
    %c0_i32_0 = arith.constant 0 : i32
    %c0_i32_1 = arith.constant 0 : i32
    return %arg1, %c0_i32, %c0_i32_0 : i32, i32, i32
  }
  func.func @transform_9(%arg0: i32, %arg1: i32) -> (i32, i32, i32) {
    %c0_i32 = arith.constant 0 : i32
    %c0_i32_0 = arith.constant 0 : i32
    %c0_i32_1 = arith.constant 0 : i32
    return %arg1, %c0_i32, %c0_i32_0 : i32, i32, i32
  }
  func.func @transform_10(%arg0: i32, %arg1: i32) -> (i32, i32, i32) {
    %c0_i32 = arith.constant 0 : i32
    %c0_i32_0 = arith.constant 0 : i32
    %c0_i32_1 = arith.constant 0 : i32
    return %arg1, %c0_i32, %c0_i32_0 : i32, i32, i32
  }
  func.func @transform_11(%arg0: i32, %arg1: i32) -> (i32, i32, i32) {
    %c0_i32 = arith.constant 0 : i32
    %c0_i32_0 = arith.constant 0 : i32
    %c0_i32_1 = arith.constant 0 : i32
    return %arg1, %c0_i32, %c0_i32_0 : i32, i32, i32
  }
  func.func @transform_12(%arg0: i32, %arg1: i32) -> (i32, i32, i32) {
    %c0_i32 = arith.constant 0 : i32
    %c0_i32_0 = arith.constant 0 : i32
    %c0_i32_1 = arith.constant 0 : i32
    return %arg1, %c0_i32, %c0_i32_0 : i32, i32, i32
  }
  func.func @transform_13(%arg0: i32, %arg1: i32) -> (i32, i32, i32) {
    %c0_i32 = arith.constant 0 : i32
    %c0_i32_0 = arith.constant 0 : i32
    %c0_i32_1 = arith.constant 0 : i32
    return %arg1, %c0_i32, %c0_i32_0 : i32, i32, i32
  }
  func.func @transform_14(%arg0: i32, %arg1: i32) -> (i32, i32) {
    %c0_i32 = arith.constant 0 : i32
    %c0_i32_0 = arith.constant 0 : i32
    return %arg0, %c0_i32 : i32, i32
  }
}

</mosaic_0001>

<llo_original>
// kernel: tpu_custom_call.1
$region0: #{tpu_custom_call.1}
  #allocation0 [shape = 'u32[]', space=smem, size = 0x4, offset = 0x4, fixed_abs, tag = 'smem constant byte address 0x4 - core index']
  #allocation1 [shape = 'u32[144,128]{1,0:T(1,128)}', space=vmem, size = 0x12000, scoped, tag = 'internal scratch']
  #allocation2 [shape = 'f32[16,32]{1,0:T(8,128)}', space=vmem, size = 0x2000, scoped, tag = 'scratch operand']
  %s0 = inlined_call_operand.hbm [shape: f32[16,32], index: 0, kind: input, shape index: {}]
  %s1 = inlined_call_operand.vmem [shape: f32[2,8], index: 1, kind: input, shape index: {}]
  %s2 = inlined_call_operand.vmem [shape: bf16[2,32,96], index: 2, kind: input, shape index: {}]
  %s3 = inlined_call_operand.vmem [shape: f32[2,1,96], index: 3, kind: input, shape index: {}]
  %s4 = inlined_call_operand.vmem [shape: bf16[2,32,32], index: 4, kind: input, shape index: {}]
  %s5 = inlined_call_operand.hbm [shape: f32[2,1,32], index: 5, kind: input, shape index: {}]
  %s6 = inlined_call_operand.hbm [shape: f32[2,1,32], index: 6, kind: input, shape index: {}]
  %s7 = inlined_call_operand.hbm [shape: f32[2,1,32], index: 7, kind: input, shape index: {}]
  %s8 = inlined_call_operand.vmem [shape: bf16[2,32,64], index: 8, kind: input, shape index: {}]
  %s9 = inlined_call_operand.hbm [shape: f32[2,1,64], index: 9, kind: input, shape index: {}]
  %s10 = inlined_call_operand.vmem [shape: bf16[2,64,32], index: 10, kind: input, shape index: {}]
  %s11 = inlined_call_operand.vmem [shape: f32[2,1,32], index: 11, kind: input, shape index: {}]
  %s12 = inlined_call_operand.vmem [shape: f32[2,1,32], index: 12, kind: input, shape index: {}]
  %s13 = inlined_call_operand.vmem [shape: f32[2,1,32], index: 13, kind: input, shape index: {}]
  %s14 = inlined_call_operand.hbm [shape: f32[2,32], index: 14, kind: output, shape index: {}]
  %s15 = sld [smem:[#allocation0]]
  $region121: #{tpu_custom_call.1} parent=0
    _
  %s17 = ssub.s32 1, %s15
  %s18 = scalar_select 0, %s17, %s15
  $region1: #{tpu_custom_call.1} parent=0
    #allocation3 [shape = 'u8[8192]{0}', space=vmem, size = 0x2000, scoped, tag = 'input window, operand 0, single buffered']
    #allocation4 [shape = 's32[2]{0}', space=sflag, size = 0x8, scoped, tag = 'scoped memory for tpu_custom_call.1']
    #allocation5 [shape = 's32[2]{0}', space=sflag, size = 0x8, scoped, tag = 'scoped memory for tpu_custom_call.1']
    #allocation6 [shape = 'u8[1024]{0}', space=vmem, size = 0x400, scoped, tag = 'input window, operand 5']
    #allocation7 [shape = 's32[2]{0}', space=sflag, size = 0x8, scoped, tag = 'scoped memory for tpu_custom_call.1']
    #allocation8 [shape = 'u8[1024]{0}', space=vmem, size = 0x400, scoped, tag = 'input window, operand 6']
    #allocation9 [shape = 'u8[1024]{0}', space=vmem, size = 0x400, scoped, tag = 'input window, operand 7']
    #allocation10 [shape = 's32[2]{0}', space=sflag, size = 0x8, scoped, tag = 'scoped memory for tpu_custom_call.1']
    #allocation11 [shape = 'u8[1024]{0}', space=vmem, size = 0x400, scoped, tag = 'input window, operand 9']
    #allocation12 [shape = 'u8[1024]{0}', space=vmem, size = 0x400, scoped, tag = 'output window, operand 0, single buffered']
    %19 = vsyncpa [#allocation4], 0
    %20 = vsyncpa [#allocation7], 0
    %s21 = scalar_lea.sflag [#allocation7], 1
    %22 = vsyncpa %s21, 0
    %23 = vsyncpa [#allocation10], 0
    %s24 = scalar_lea.sflag [#allocation10], 1
    %25 = vsyncpa %s24, 0
    %26 = vsyncpa [#allocation5], 0
    loop: start=0, step=1, limit=4
    $region2: #{tpu_custom_call.1} parent=1 // loop_pre_header
      _
    $region3: #{tpu_custom_call.1} parent=1 // loop_header
      %s28 = sphi 0, %s32
      %p29 = scmp.ge.s32.totalorder %s28, 4
      %s35 = sphi 0, %s47
      %s36 = sphi 0, %s43
      %s37 = sphi 0, %s35
      %s38 = sphi 0, %s36
      %s39 = sphi 0, %s37
      %s40 = sphi 0, %s38
      %s50 = sphi 0, %s52
      %s53 = sphi 0, %s50
      %s54 = sphi 0, %s53
      %s70 = sphi 0, %s54
      %s76 = sphi 0, %s78
      %s79 = sphi 0, %s76
      %s80 = sphi 0, %s79
      %s96 = sphi 0, %s80
      %s102 = sphi 0, %s104
      %s105 = sphi 0, %s102
      %s106 = sphi 0, %s105
      %s122 = sphi 0, %s106
      %s128 = sphi 0, %s130
      %s131 = sphi 0, %s128
      %s132 = sphi 0, %s131
      %s148 = sphi 0, %s132
      %s154 = sphi 0, %s156
      %s157 = sphi 0, %s154
      %s158 = sphi 0, %s157
      %s174 = sphi 0, %s158
      %s180 = sphi 0, %s182
      %s183 = sphi 0, %s180
      %s184 = sphi 0, %s183
      %s200 = sphi 0, %s184
      %s206 = sphi 0, %s208
      %s209 = sphi 0, %s206
      %s210 = sphi 0, %s209
      %s226 = sphi 0, %s210
      %s232 = sphi 0, %s234
      %s235 = sphi 0, %s232
      %s236 = sphi 0, %s235
      %s252 = sphi 0, %s236
      %s258 = sphi 0, %s260
      %s261 = sphi 0, %s258
      %s262 = sphi 0, %s261
      %s278 = sphi 0, %s262
      %s284 = sphi 0, %s286
      %s287 = sphi 0, %s284
      %s288 = sphi 0, %s287
      %s304 = sphi 0, %s288
      %s310 = sphi 0, %s312
      %s313 = sphi 0, %s310
      %s314 = sphi 0, %s313
      %s330 = sphi 0, %s314
      %s336 = sphi 0, %s338
      %s339 = sphi 0, %s336
      %s340 = sphi 0, %s339
      %s356 = sphi 0, %s340
      %s362 = sphi 0, %s364
      %s365 = sphi 0, %s362
      %s366 = sphi 0, %s365
      %s382 = sphi 0, %s366
      %s388 = sphi 0, %s390
      %s391 = sphi 0, %s388
      %s392 = sphi 0, %s391
      %s408 = sphi 0, %s392
      %s414 = sphi 0, %s416
      %s417 = sphi 0, %s414
      %s418 = sphi 0, %s417
      %s434 = sphi 0, %s418
    $region4: #{tpu_custom_call.1} parent=1 // loop_header_branch
      %31 = sbr.rel (%p29) target = $region8
    $region5: #{tpu_custom_call.1} parent=1 // loop_body
      %s33 = ssub.s32 %s28, 1
      %s34 = ssub.s32 %s28, 2
      %s41 = sadd.s32 1, %s36
      %p42 = scmp.ge.s32.totalorder %s41, 2
      %s43 = scalar_select %p42, 0, %s41
      %s44 = sadd.s32 1, %s35
      %s45 = scalar_select %p42, %s44, %s35
      %p46 = scmp.ge.s32.totalorder %s45, 1
      %s47 = scalar_select %p46, 0, %s45
      %s48 = ssub.s32 %s35, %s47
      %p49 = scmp.eq.s32.totalorder %s48, 0
      %s51 = sadd.s32 %s50, 1
      %s52 = scalar_select %p49, %s50, %s51
      %p55 = pneg %p49
      %p56 = scmp.eq.s32.totalorder %s28, 1
      %p57 = por %p55, %p56
      %p58 = scmp.ne.s32.totalorder %s50, %s53
      %p59 = scmp.eq.s32.totalorder %s28, 0
      %p60 = por %p58, %p59
      %p61 = scmp.ne.s32.totalorder %s50, %s53
      %p62 = scmp.eq.s32.totalorder %s33, 1
      %p63 = por %p61, %p62
      %p64 = scmp.ne.s32.totalorder %s53, %s54
      %p65 = scmp.eq.s32.totalorder %s33, 0
      %p66 = por %p64, %p65
      %p67 = scmp.ne.s32.totalorder %s53, %s54
      %p68 = scmp.eq.s32.totalorder %s34, 1
      %p69 = por %p67, %p68
      %p71 = scmp.ne.s32.totalorder %s54, %s70
      %p72 = scmp.eq.s32.totalorder %s34, 0
      %p73 = por %p71, %p72
      %s74 = ssub.s32 %s35, %s47
      %p75 = scmp.eq.s32.totalorder %s74, 0
      %s77 = sadd.s32 %s76, 1
      %s78 = scalar_select %p75, %s76, %s77
      %p81 = pneg %p75
      %p82 = scmp.eq.s32.totalorder %s28, 1
      %p83 = por %p81, %p82
      %p84 = scmp.ne.s32.totalorder %s76, %s79
      %p85 = scmp.eq.s32.totalorder %s28, 0
      %p86 = por %p84, %p85
      %p87 = scmp.ne.s32.totalorder %s76, %s79
      %p88 = scmp.eq.s32.totalorder %s33, 1
      %p89 = por %p87, %p88
      %p90 = scmp.ne.s32.totalorder %s79, %s80
      %p91 = scmp.eq.s32.totalorder %s33, 0
      %p92 = por %p90, %p91
      %p93 = scmp.ne.s32.totalorder %s79, %s80
      %p94 = scmp.eq.s32.totalorder %s34, 1
      %p95 = por %p93, %p94
      %p97 = scmp.ne.s32.totalorder %s80, %s96
      %p98 = scmp.eq.s32.totalorder %s34, 0
      %p99 = por %p97, %p98
      %s100 = ssub.s32 %s36, %s43
      %p101 = scmp.eq.s32.totalorder %s100, 0
      %s103 = sadd.s32 %s102, 1
      %s104 = scalar_select %p101, %s102, %s103
      %p107 = pneg %p101
      %p108 = scmp.eq.s32.totalorder %s28, 1
      %p109 = por %p107, %p108
      %p110 = scmp.ne.s32.totalorder %s102, %s105
      %p111 = scmp.eq.s32.totalorder %s28, 0
      %p112 = por %p110, %p111
      %p113 = scmp.ne.s32.totalorder %s102, %s105
      %p114 = scmp.eq.s32.totalorder %s33, 1
      %p115 = por %p113, %p114
      %p116 = scmp.ne.s32.totalorder %s105, %s106
      %p117 = scmp.eq.s32.totalorder %s33, 0
      %p118 = por %p116, %p117
      %p119 = scmp.ne.s32.totalorder %s105, %s106
      %p120 = scmp.eq.s32.totalorder %s34, 1
      %p121 = por %p119, %p120
      %p123 = scmp.ne.s32.totalorder %s106, %s122
      %p124 = scmp.eq.s32.totalorder %s34, 0
      %p125 = por %p123, %p124
      %s126 = ssub.s32 %s36, %s43
      %p127 = scmp.eq.s32.totalorder %s126, 0
      %s129 = sadd.s32 %s128, 1
      %s130 = scalar_select %p127, %s128, %s129
      %p133 = pneg %p127
      %p134 = scmp.eq.s32.totalorder %s28, 1
      %p135 = por %p133, %p134
      %p136 = scmp.ne.s32.totalorder %s128, %s131
      %p137 = scmp.eq.s32.totalorder %s28, 0
      %p138 = por %p136, %p137
      %p139 = scmp.ne.s32.totalorder %s128, %s131
      %p140 = scmp.eq.s32.totalorder %s33, 1
      %p141 = por %p139, %p140
      %p142 = scmp.ne.s32.totalorder %s131, %s132
      %p143 = scmp.eq.s32.totalorder %s33, 0
      %p144 = por %p142, %p143
      %p145 = scmp.ne.s32.totalorder %s131, %s132
      %p146 = scmp.eq.s32.totalorder %s34, 1
      %p147 = por %p145, %p146
      %p149 = scmp.ne.s32.totalorder %s132, %s148
      %p150 = scmp.eq.s32.totalorder %s34, 0
      %p151 = por %p149, %p150
      %s152 = ssub.s32 %s36, %s43
      %p153 = scmp.eq.s32.totalorder %s152, 0
      %s155 = sadd.s32 %s154, 1
      %s156 = scalar_select %p153, %s154, %s155
      %p159 = pneg %p153
      %p160 = scmp.eq.s32.totalorder %s28, 1
      %p161 = por %p159, %p160
      %p162 = scmp.ne.s32.totalorder %s154, %s157
      %p163 = scmp.eq.s32.totalorder %s28, 0
      %p164 = por %p162, %p163
      %p165 = scmp.ne.s32.totalorder %s154, %s157
      %p166 = scmp.eq.s32.totalorder %s33, 1
      %p167 = por %p165, %p166
      %p168 = scmp.ne.s32.totalorder %s157, %s158
      %p169 = scmp.eq.s32.totalorder %s33, 0
      %p170 = por %p168, %p169
      %p171 = scmp.ne.s32.totalorder %s157, %s158
      %p172 = scmp.eq.s32.totalorder %s34, 1
      %p173 = por %p171, %p172
      %p175 = scmp.ne.s32.totalorder %s158, %s174
      %p176 = scmp.eq.s32.totalorder %s34, 0
      %p177 = por %p175, %p176
      %s178 = ssub.s32 %s36, %s43
      %p179 = scmp.eq.s32.totalorder %s178, 0
      %s181 = sadd.s32 %s180, 1
      %s182 = scalar_select %p179, %s180, %s181
      %p185 = pneg %p179
      %p186 = scmp.eq.s32.totalorder %s28, 1
      %p187 = por %p185, %p186
      %p188 = scmp.ne.s32.totalorder %s180, %s183
      %p189 = scmp.eq.s32.totalorder %s28, 0
      %p190 = por %p188, %p189
      %p191 = scmp.ne.s32.totalorder %s180, %s183
      %p192 = scmp.eq.s32.totalorder %s33, 1
      %p193 = por %p191, %p192
      %p194 = scmp.ne.s32.totalorder %s183, %s184
      %p195 = scmp.eq.s32.totalorder %s33, 0
      %p196 = por %p194, %p195
      %p197 = scmp.ne.s32.totalorder %s183, %s184
      %p198 = scmp.eq.s32.totalorder %s34, 1
      %p199 = por %p197, %p198
      %p201 = scmp.ne.s32.totalorder %s184, %s200
      %p202 = scmp.eq.s32.totalorder %s34, 0
      %p203 = por %p201, %p202
      %s204 = ssub.s32 %s36, %s43
      %p205 = scmp.eq.s32.totalorder %s204, 0
      %s207 = sadd.s32 %s206, 1
      %s208 = scalar_select %p205, %s206, %s207
      %p211 = pneg %p205
      %p212 = scmp.eq.s32.totalorder %s28, 1
      %p213 = por %p211, %p212
      %p214 = scmp.ne.s32.totalorder %s206, %s209
      %p215 = scmp.eq.s32.totalorder %s28, 0
      %p216 = por %p214, %p215
      %p217 = scmp.ne.s32.totalorder %s206, %s209
      %p218 = scmp.eq.s32.totalorder %s33, 1
      %p219 = por %p217, %p218
      %p220 = scmp.ne.s32.totalorder %s209, %s210
      %p221 = scmp.eq.s32.totalorder %s33, 0
      %p222 = por %p220, %p221
      %p223 = scmp.ne.s32.totalorder %s209, %s210
      %p224 = scmp.eq.s32.totalorder %s34, 1
      %p225 = por %p223, %p224
      %p227 = scmp.ne.s32.totalorder %s210, %s226
      %p228 = scmp.eq.s32.totalorder %s34, 0
      %p229 = por %p227, %p228
      %s230 = ssub.s32 %s36, %s43
      %p231 = scmp.eq.s32.totalorder %s230, 0
      %s233 = sadd.s32 %s232, 1
      %s234 = scalar_select %p231, %s232, %s233
      %p237 = pneg %p231
      %p238 = scmp.eq.s32.totalorder %s28, 1
      %p239 = por %p237, %p238
      %p240 = scmp.ne.s32.totalorder %s232, %s235
      %p241 = scmp.eq.s32.totalorder %s28, 0
      %p242 = por %p240, %p241
      %p243 = scmp.ne.s32.totalorder %s232, %s235
      %p244 = scmp.eq.s32.totalorder %s33, 1
      %p245 = por %p243, %p244
      %p246 = scmp.ne.s32.totalorder %s235, %s236
      %p247 = scmp.eq.s32.totalorder %s33, 0
      %p248 = por %p246, %p247
      %p249 = scmp.ne.s32.totalorder %s235, %s236
      %p250 = scmp.eq.s32.totalorder %s34, 1
      %p251 = por %p249, %p250
      %p253 = scmp.ne.s32.totalorder %s236, %s252
      %p254 = scmp.eq.s32.totalorder %s34, 0
      %p255 = por %p253, %p254
      %s256 = ssub.s32 %s36, %s43
      %p257 = scmp.eq.s32.totalorder %s256, 0
      %s259 = sadd.s32 %s258, 1
      %s260 = scalar_select %p257, %s258, %s259
      %p263 = pneg %p257
      %p264 = scmp.eq.s32.totalorder %s28, 1
      %p265 = por %p263, %p264
      %p266 = scmp.ne.s32.totalorder %s258, %s261
      %p267 = scmp.eq.s32.totalorder %s28, 0
      %p268 = por %p266, %p267
      %p269 = scmp.ne.s32.totalorder %s258, %s261
      %p270 = scmp.eq.s32.totalorder %s33, 1
      %p271 = por %p269, %p270
      %p272 = scmp.ne.s32.totalorder %s261, %s262
      %p273 = scmp.eq.s32.totalorder %s33, 0
      %p274 = por %p272, %p273
      %p275 = scmp.ne.s32.totalorder %s261, %s262
      %p276 = scmp.eq.s32.totalorder %s34, 1
      %p277 = por %p275, %p276
      %p279 = scmp.ne.s32.totalorder %s262, %s278
      %p280 = scmp.eq.s32.totalorder %s34, 0
      %p281 = por %p279, %p280
      %s282 = ssub.s32 %s36, %s43
      %p283 = scmp.eq.s32.totalorder %s282, 0
      %s285 = sadd.s32 %s284, 1
      %s286 = scalar_select %p283, %s284, %s285
      %p289 = pneg %p283
      %p290 = scmp.eq.s32.totalorder %s28, 1
      %p291 = por %p289, %p290
      %p292 = scmp.ne.s32.totalorder %s284, %s287
      %p293 = scmp.eq.s32.totalorder %s28, 0
      %p294 = por %p292, %p293
      %p295 = scmp.ne.s32.totalorder %s284, %s287
      %p296 = scmp.eq.s32.totalorder %s33, 1
      %p297 = por %p295, %p296
      %p298 = scmp.ne.s32.totalorder %s287, %s288
      %p299 = scmp.eq.s32.totalorder %s33, 0
      %p300 = por %p298, %p299
      %p301 = scmp.ne.s32.totalorder %s287, %s288
      %p302 = scmp.eq.s32.totalorder %s34, 1
      %p303 = por %p301, %p302
      %p305 = scmp.ne.s32.totalorder %s288, %s304
      %p306 = scmp.eq.s32.totalorder %s34, 0
      %p307 = por %p305, %p306
      %s308 = ssub.s32 %s36, %s43
      %p309 = scmp.eq.s32.totalorder %s308, 0
      %s311 = sadd.s32 %s310, 1
      %s312 = scalar_select %p309, %s310, %s311
      %p315 = pneg %p309
      %p316 = scmp.eq.s32.totalorder %s28, 1
      %p317 = por %p315, %p316
      %p318 = scmp.ne.s32.totalorder %s310, %s313
      %p319 = scmp.eq.s32.totalorder %s28, 0
      %p320 = por %p318, %p319
      %p321 = scmp.ne.s32.totalorder %s310, %s313
      %p322 = scmp.eq.s32.totalorder %s33, 1
      %p323 = por %p321, %p322
      %p324 = scmp.ne.s32.totalorder %s313, %s314
      %p325 = scmp.eq.s32.totalorder %s33, 0
      %p326 = por %p324, %p325
      %p327 = scmp.ne.s32.totalorder %s313, %s314
      %p328 = scmp.eq.s32.totalorder %s34, 1
      %p329 = por %p327, %p328
      %p331 = scmp.ne.s32.totalorder %s314, %s330
      %p332 = scmp.eq.s32.totalorder %s34, 0
      %p333 = por %p331, %p332
      %s334 = ssub.s32 %s36, %s43
      %p335 = scmp.eq.s32.totalorder %s334, 0
      %s337 = sadd.s32 %s336, 1
      %s338 = scalar_select %p335, %s336, %s337
      %p341 = pneg %p335
      %p342 = scmp.eq.s32.totalorder %s28, 1
      %p343 = por %p341, %p342
      %p344 = scmp.ne.s32.totalorder %s336, %s339
      %p345 = scmp.eq.s32.totalorder %s28, 0
      %p346 = por %p344, %p345
      %p347 = scmp.ne.s32.totalorder %s336, %s339
      %p348 = scmp.eq.s32.totalorder %s33, 1
      %p349 = por %p347, %p348
      %p350 = scmp.ne.s32.totalorder %s339, %s340
      %p351 = scmp.eq.s32.totalorder %s33, 0
      %p352 = por %p350, %p351
      %p353 = scmp.ne.s32.totalorder %s339, %s340
      %p354 = scmp.eq.s32.totalorder %s34, 1
      %p355 = por %p353, %p354
      %p357 = scmp.ne.s32.totalorder %s340, %s356
      %p358 = scmp.eq.s32.totalorder %s34, 0
      %p359 = por %p357, %p358
      %s360 = ssub.s32 %s36, %s43
      %p361 = scmp.eq.s32.totalorder %s360, 0
      %s363 = sadd.s32 %s362, 1
      %s364 = scalar_select %p361, %s362, %s363
      %p367 = pneg %p361
      %p368 = scmp.eq.s32.totalorder %s28, 1
      %p369 = por %p367, %p368
      %p370 = scmp.ne.s32.totalorder %s362, %s365
      %p371 = scmp.eq.s32.totalorder %s28, 0
      %p372 = por %p370, %p371
      %p373 = scmp.ne.s32.totalorder %s362, %s365
      %p374 = scmp.eq.s32.totalorder %s33, 1
      %p375 = por %p373, %p374
      %p376 = scmp.ne.s32.totalorder %s365, %s366
      %p377 = scmp.eq.s32.totalorder %s33, 0
      %p378 = por %p376, %p377
      %p379 = scmp.ne.s32.totalorder %s365, %s366
      %p380 = scmp.eq.s32.totalorder %s34, 1
      %p381 = por %p379, %p380
      %p383 = scmp.ne.s32.totalorder %s366, %s382
      %p384 = scmp.eq.s32.totalorder %s34, 0
      %p385 = por %p383, %p384
      %s386 = ssub.s32 %s36, %s43
      %p387 = scmp.eq.s32.totalorder %s386, 0
      %s389 = sadd.s32 %s388, 1
      %s390 = scalar_select %p387, %s388, %s389
      %p393 = pneg %p387
      %p394 = scmp.eq.s32.totalorder %s28, 1
      %p395 = por %p393, %p394
      %p396 = scmp.ne.s32.totalorder %s388, %s391
      %p397 = scmp.eq.s32.totalorder %s28, 0
      %p398 = por %p396, %p397
      %p399 = scmp.ne.s32.totalorder %s388, %s391
      %p400 = scmp.eq.s32.totalorder %s33, 1
      %p401 = por %p399, %p400
      %p402 = scmp.ne.s32.totalorder %s391, %s392
      %p403 = scmp.eq.s32.totalorder %s33, 0
      %p404 = por %p402, %p403
      %p405 = scmp.ne.s32.totalorder %s391, %s392
      %p406 = scmp.eq.s32.totalorder %s34, 1
      %p407 = por %p405, %p406
      %p409 = scmp.ne.s32.totalorder %s392, %s408
      %p410 = scmp.eq.s32.totalorder %s34, 0
      %p411 = por %p409, %p410
      %s412 = ssub.s32 %s35, %s47
      %p413 = scmp.eq.s32.totalorder %s412, 0
      %s415 = sadd.s32 %s414, 1
      %s416 = scalar_select %p413, %s414, %s415
      %p419 = pneg %p413
      %p420 = scmp.eq.s32.totalorder %s28, 1
      %p421 = por %p419, %p420
      %p422 = scmp.ne.s32.totalorder %s414, %s417
      %p423 = scmp.eq.s32.totalorder %s28, 0
      %p424 = por %p422, %p423
      %p425 = scmp.ne.s32.totalorder %s414, %s417
      %p426 = scmp.eq.s32.totalorder %s33, 1
      %p427 = por %p425, %p426
      %p428 = scmp.ne.s32.totalorder %s417, %s418
      %p429 = scmp.eq.s32.totalorder %s33, 0
      %p430 = por %p428, %p429
      %p431 = scmp.ne.s32.totalorder %s417, %s418
      %p432 = scmp.eq.s32.totalorder %s34, 1
      %p433 = por %p431, %p432
      %p435 = scmp.ne.s32.totalorder %s418, %s434
      %p436 = scmp.eq.s32.totalorder %s34, 0
      %p437 = por %p435, %p436
      %p438 = scmp.le.s32.totalorder 1, %s28
      %p439 = scmp.lt.s32.totalorder %s28, 3
      %p440 = pnand %p438, %p439
      %p441 = pneg %p440
      // Predicated region
      $region9: #{tpu_custom_call.1} parent=5 // pred_check
        _
      $region10: #{tpu_custom_call.1} parent=5 // pred_check_branch
        %443 = sbr.rel (%p440) target = $region12
      $region11: #{tpu_custom_call.1} parent=5 // pred_region
        %s444 = ssub.s32 %s28, 1
        // Predicated region
        $region13: #{tpu_custom_call.1} parent=11 // pred_check
          %p445 = pneg %p66
        $region14: #{tpu_custom_call.1} parent=11 // pred_check_branch
          %447 = sbr.rel (%p445) target = $region16
        $region15: #{tpu_custom_call.1} parent=11 // pred_region
          %s448 = smul.u32 2, %s37
          %s450 = ssub.s32 256, 256
          %451 = vsyncadd [#allocation4], %s450
          %s452 = smul.addr %s448, 128
          %s453 = scalar_lea.hbm %s0, %s452
          %s454 = sshll.u32 [#allocation3], 4
          %s455 = int_to_ptr.vmem [resolvable:$true] %s454
          %460 = dma.hbm_to_vmem [thread:$0]  %s453, 256, %s455, [#allocation4], 128, 128, 8
        $region16: #{tpu_custom_call.1} parent=11 // pred_fallthru
          _
        // Predicated region
        $region17: #{tpu_custom_call.1} parent=11 // pred_check
          %p461 = pneg %p92
        $region18: #{tpu_custom_call.1} parent=11 // pred_check_branch
          %463 = sbr.rel (%p461) target = $region20
        $region19: #{tpu_custom_call.1} parent=11 // pred_region
          %p464 = scmp.lt.s32.totalorder %s37, 0
          %s465 = scalar_select %p464, %s37, 0
          %s466 = smul.addr %s465, 2
          %s467 = scalar_lea.vmem %s1, %s466
        $region20: #{tpu_custom_call.1} parent=11 // pred_fallthru
          _
      $region12: #{tpu_custom_call.1} parent=5 // pred_fallthru
        _
      %p468 = scmp.lt.s32.totalorder %s28, 2
      // Predicated region
      $region21: #{tpu_custom_call.1} parent=5 // pred_check
        %p469 = pneg %p468
      $region22: #{tpu_custom_call.1} parent=5 // pred_check_branch
        %471 = sbr.rel (%p469) target = $region24
      $region23: #{tpu_custom_call.1} parent=5 // pred_region
        // Predicated region
        $region25: #{tpu_custom_call.1} parent=23 // pred_check
          %p472 = pneg %p112
        $region26: #{tpu_custom_call.1} parent=23 // pred_check_branch
          %474 = sbr.rel (%p472) target = $region28
        $region27: #{tpu_custom_call.1} parent=23 // pred_region
          %p475 = scmp.lt.s32.totalorder %s36, 1
          %s476 = scalar_select %p475, %s36, 1
          %s477 = smul.addr %s476, 4
          %s478 = smul.addr %s477, 4
          %s479 = scalar_lea.vmem %s2, %s478
        $region28: #{tpu_custom_call.1} parent=23 // pred_fallthru
          _
        // Predicated region
        $region29: #{tpu_custom_call.1} parent=23 // pred_check
          %p480 = pneg %p138
        $region30: #{tpu_custom_call.1} parent=23 // pred_check_branch
          %482 = sbr.rel (%p480) target = $region32
        $region31: #{tpu_custom_call.1} parent=23 // pred_region
          %p483 = scmp.lt.s32.totalorder %s36, 1
          %s484 = scalar_select %p483, %s36, 1
          %s485 = scalar_lea.vmem %s3, %s484
        $region32: #{tpu_custom_call.1} parent=23 // pred_fallthru
          _
        // Predicated region
        $region33: #{tpu_custom_call.1} parent=23 // pred_check
          %p486 = pneg %p164
        $region34: #{tpu_custom_call.1} parent=23 // pred_check_branch
          %488 = sbr.rel (%p486) target = $region36
        $region35: #{tpu_custom_call.1} parent=23 // pred_region
          %p489 = scmp.lt.s32.totalorder %s36, 1
          %s490 = scalar_select %p489, %s36, 1
          %s491 = smul.addr %s490, 4
          %s492 = smul.addr %s491, 4
          %s493 = scalar_lea.vmem %s4, %s492
        $region36: #{tpu_custom_call.1} parent=23 // pred_fallthru
          _
        // Predicated region
        $region37: #{tpu_custom_call.1} parent=23 // pred_check
          %p494 = pneg %p190
        $region38: #{tpu_custom_call.1} parent=23 // pred_check_branch
          %496 = sbr.rel (%p494) target = $region40
        $region39: #{tpu_custom_call.1} parent=23 // pred_region
          %s497 = sand.u32 %s28, 1
          %s498 = scalar_lea.sflag [#allocation7], %s497
          %s499 = sand.u32 %s180, 1
          %s500 = scalar_lea.vmem [#allocation6], %s499
          %s502 = ssub.s32 16, 16
          %503 = vsyncadd %s498, %s502
          %s504 = smul.addr %s36, 16
          %s505 = scalar_lea.hbm %s5, %s504
          %s507 = sshll.u32 %s500, 4
          %s508 = int_to_ptr.vmem [resolvable:$true] %s507
          %510 = dma.hbm_to_vmem [thread:$0]  %s505, 16, %s508, %s498
        $region40: #{tpu_custom_call.1} parent=23 // pred_fallthru
          _
        // Predicated region
        $region41: #{tpu_custom_call.1} parent=23 // pred_check
          %p511 = pneg %p216
        $region42: #{tpu_custom_call.1} parent=23 // pred_check_branch
          %513 = sbr.rel (%p511) target = $region44
        $region43: #{tpu_custom_call.1} parent=23 // pred_region
          %s514 = sand.u32 %s28, 1
          %s515 = scalar_lea.sflag [#allocation7], %s514
          %s516 = sand.u32 %s206, 1
          %s517 = scalar_lea.vmem [#allocation8], %s516
          %s519 = ssub.s32 16, 16
          %520 = vsyncadd %s515, %s519
          %s521 = smul.addr %s36, 16
          %s522 = scalar_lea.hbm %s6, %s521
          %s524 = sshll.u32 %s517, 4
          %s525 = int_to_ptr.vmem [resolvable:$true] %s524
          %527 = dma.hbm_to_vmem [thread:$0]  %s522, 16, %s525, %s515
        $region44: #{tpu_custom_call.1} parent=23 // pred_fallthru
          _
        // Predicated region
        $region45: #{tpu_custom_call.1} parent=23 // pred_check
          %p528 = pneg %p242
        $region46: #{tpu_custom_call.1} parent=23 // pred_check_branch
          %530 = sbr.rel (%p528) target = $region48
        $region47: #{tpu_custom_call.1} parent=23 // pred_region
          %s531 = sand.u32 %s28, 1
          %s532 = scalar_lea.sflag [#allocation10], %s531
          %s533 = sand.u32 %s232, 1
          %s534 = scalar_lea.vmem [#allocation9], %s533
          %s536 = ssub.s32 16, 16
          %537 = vsyncadd %s532, %s536
          %s538 = smul.addr %s36, 16
          %s539 = scalar_lea.hbm %s7, %s538
          %s541 = sshll.u32 %s534, 4
          %s542 = int_to_ptr.vmem [resolvable:$true] %s541
          %544 = dma.hbm_to_vmem [thread:$0]  %s539, 16, %s542, %s532
        $region48: #{tpu_custom_call.1} parent=23 // pred_fallthru
          _
        // Predicated region
        $region49: #{tpu_custom_call.1} parent=23 // pred_check
          %p545 = pneg %p268
        $region50: #{tpu_custom_call.1} parent=23 // pred_check_branch
          %547 = sbr.rel (%p545) target = $region52
        $region51: #{tpu_custom_call.1} parent=23 // pred_region
          %p548 = scmp.lt.s32.totalorder %s36, 1
          %s549 = scalar_select %p548, %s36, 1
          %s550 = smul.addr %s549, 4
          %s551 = smul.addr %s550, 4
          %s552 = scalar_lea.vmem %s8, %s551
        $region52: #{tpu_custom_call.1} parent=23 // pred_fallthru
          _
        // Predicated region
        $region53: #{tpu_custom_call.1} parent=23 // pred_check
          %p553 = pneg %p294
        $region54: #{tpu_custom_call.1} parent=23 // pred_check_branch
          %555 = sbr.rel (%p553) target = $region56
        $region55: #{tpu_custom_call.1} parent=23 // pred_region
          %s556 = sand.u32 %s28, 1
          %s557 = scalar_lea.sflag [#allocation10], %s556
          %s558 = sand.u32 %s284, 1
          %s559 = scalar_lea.vmem [#allocation11], %s558
          %s561 = ssub.s32 16, 16
          %562 = vsyncadd %s557, %s561
          %s563 = smul.addr %s36, 16
          %s564 = scalar_lea.hbm %s9, %s563
          %s566 = sshll.u32 %s559, 4
          %s567 = int_to_ptr.vmem [resolvable:$true] %s566
          %569 = dma.hbm_to_vmem [thread:$0]  %s564, 16, %s567, %s557
        $region56: #{tpu_custom_call.1} parent=23 // pred_fallthru
          _
        // Predicated region
        $region57: #{tpu_custom_call.1} parent=23 // pred_check
          %p570 = pneg %p320
        $region58: #{tpu_custom_call.1} parent=23 // pred_check_branch
          %572 = sbr.rel (%p570) target = $region60
        $region59: #{tpu_custom_call.1} parent=23 // pred_region
          %p573 = scmp.lt.s32.totalorder %s36, 1
          %s574 = scalar_select %p573, %s36, 1
          %s575 = smul.addr %s574, 8
          %s576 = smul.addr %s575, 4
          %s577 = scalar_lea.vmem %s10, %s576
        $region60: #{tpu_custom_call.1} parent=23 // pred_fallthru
          _
        // Predicated region
        $region61: #{tpu_custom_call.1} parent=23 // pred_check
          %p578 = pneg %p346
        $region62: #{tpu_custom_call.1} parent=23 // pred_check_branch
          %580 = sbr.rel (%p578) target = $region64
        $region63: #{tpu_custom_call.1} parent=23 // pred_region
          %p581 = scmp.lt.s32.totalorder %s36, 1
          %s582 = scalar_select %p581, %s36, 1
          %s583 = scalar_lea.vmem %s11, %s582
        $region64: #{tpu_custom_call.1} parent=23 // pred_fallthru
          _
        // Predicated region
        $region65: #{tpu_custom_call.1} parent=23 // pred_check
          %p584 = pneg %p372
        $region66: #{tpu_custom_call.1} parent=23 // pred_check_branch
          %586 = sbr.rel (%p584) target = $region68
        $region67: #{tpu_custom_call.1} parent=23 // pred_region
          %p587 = scmp.lt.s32.totalorder %s36, 1
          %s588 = scalar_select %p587, %s36, 1
          %s589 = scalar_lea.vmem %s12, %s588
        $region68: #{tpu_custom_call.1} parent=23 // pred_fallthru
          _
        // Predicated region
        $region69: #{tpu_custom_call.1} parent=23 // pred_check
          %p590 = pneg %p398
        $region70: #{tpu_custom_call.1} parent=23 // pred_check_branch
          %592 = sbr.rel (%p590) target = $region72
        $region71: #{tpu_custom_call.1} parent=23 // pred_region
          %p593 = scmp.lt.s32.totalorder %s36, 1
          %s594 = scalar_select %p593, %s36, 1
          %s595 = scalar_lea.vmem %s13, %s594
        $region72: #{tpu_custom_call.1} parent=23 // pred_fallthru
          _
      $region24: #{tpu_custom_call.1} parent=5 // pred_fallthru
        _
      %p596 = scmp.le.s32.totalorder 1, %s28
      %p597 = scmp.lt.s32.totalorder %s28, 3
      %p598 = pnand %p596, %p597
      %p599 = pneg %p598
      // Predicated region
      $region73: #{tpu_custom_call.1} parent=5 // pred_check
        _
      $region74: #{tpu_custom_call.1} parent=5 // pred_check_branch
        %601 = sbr.rel (%p598) target = $region76
      $region75: #{tpu_custom_call.1} parent=5 // pred_region
        %s602 = ssub.s32 %s28, 1
        // Predicated region
        $region77: #{tpu_custom_call.1} parent=75 // pred_check
          %p603 = pneg %p66
        $region78: #{tpu_custom_call.1} parent=75 // pred_check_branch
          %605 = sbr.rel (%p603) target = $region80
        $region79: #{tpu_custom_call.1} parent=75 // pred_region
          %606 = dma.done [#allocation4], 256
        $region80: #{tpu_custom_call.1} parent=75 // pred_fallthru
          _
        %s607 = sand.u32 %s33, 1
        %s608 = scalar_lea.sflag [#allocation7], %s607
        %s609 = sand.u32 %s183, 1
        %s610 = scalar_lea.vmem [#allocation6], %s609
        // Predicated region
        $region81: #{tpu_custom_call.1} parent=75 // pred_check
          %p611 = pneg %p196
        $region82: #{tpu_custom_call.1} parent=75 // pred_check_branch
          %613 = sbr.rel (%p611) target = $region84
        $region83: #{tpu_custom_call.1} parent=75 // pred_region
          %614 = dma.done %s608, 16
        $region84: #{tpu_custom_call.1} parent=75 // pred_fallthru
          _
        %s615 = sand.u32 %s33, 1
        %s616 = scalar_lea.sflag [#allocation7], %s615
        %s617 = sand.u32 %s209, 1
        %s618 = scalar_lea.vmem [#allocation8], %s617
        // Predicated region
        $region85: #{tpu_custom_call.1} parent=75 // pred_check
          %p619 = pneg %p222
        $region86: #{tpu_custom_call.1} parent=75 // pred_check_branch
          %621 = sbr.rel (%p619) target = $region88
        $region87: #{tpu_custom_call.1} parent=75 // pred_region
          %622 = dma.done %s616, 16
        $region88: #{tpu_custom_call.1} parent=75 // pred_fallthru
          _
        %s623 = sand.u32 %s33, 1
        %s624 = scalar_lea.sflag [#allocation10], %s623
        %s625 = sand.u32 %s235, 1
        %s626 = scalar_lea.vmem [#allocation9], %s625
        // Predicated region
        $region89: #{tpu_custom_call.1} parent=75 // pred_check
          %p627 = pneg %p248
        $region90: #{tpu_custom_call.1} parent=75 // pred_check_branch
          %629 = sbr.rel (%p627) target = $region92
        $region91: #{tpu_custom_call.1} parent=75 // pred_region
          %630 = dma.done %s624, 16
        $region92: #{tpu_custom_call.1} parent=75 // pred_fallthru
          _
        %s631 = sand.u32 %s33, 1
        %s632 = scalar_lea.sflag [#allocation10], %s631
        %s633 = sand.u32 %s287, 1
        %s634 = scalar_lea.vmem [#allocation11], %s633
        // Predicated region
        $region93: #{tpu_custom_call.1} parent=75 // pred_check
          %p635 = pneg %p300
        $region94: #{tpu_custom_call.1} parent=75 // pred_check_branch
          %637 = sbr.rel (%p635) target = $region96
        $region95: #{tpu_custom_call.1} parent=75 // pred_region
          %638 = dma.done %s632, 16
        $region96: #{tpu_custom_call.1} parent=75 // pred_fallthru
          _
        %p639 = pneg %p66
        %p640 = pneg %p63
        %p641 = scmp.lt.s32.totalorder %s37, 0
        %s642 = scalar_select %p641, %s37, 0
        %s643 = smul.addr %s642, 2
        %s644 = scalar_lea.vmem %s1, %s643
        %p645 = pneg %p92
        %p646 = pneg %p89
        %p647 = scmp.lt.s32.totalorder %s38, 1
        %s648 = scalar_select %p647, %s38, 1
        %s649 = smul.addr %s648, 4
        %s650 = smul.addr %s649, 4
        %s651 = scalar_lea.vmem %s2, %s650
        %p652 = pneg %p118
        %p653 = pneg %p115
        %p654 = scmp.lt.s32.totalorder %s38, 1
        %s655 = scalar_select %p654, %s38, 1
        %s656 = scalar_lea.vmem %s3, %s655
        %p657 = pneg %p144
        %p658 = pneg %p141
        %p659 = scmp.lt.s32.totalorder %s38, 1
        %s660 = scalar_select %p659, %s38, 1
        %s661 = smul.addr %s660, 4
        %s662 = smul.addr %s661, 4
        %s663 = scalar_lea.vmem %s4, %s662
        %p664 = pneg %p170
        %p665 = pneg %p167
        %s666 = sand.u32 %s33, 1
        %s667 = scalar_lea.sflag [#allocation7], %s666
        %s668 = sand.u32 %s183, 1
        %s669 = scalar_lea.vmem [#allocation6], %s668
        %p670 = pneg %p196
        %p671 = pneg %p193
        %s672 = sand.u32 %s33, 1
        %s673 = scalar_lea.sflag [#allocation7], %s672
        %s674 = sand.u32 %s209, 1
        %s675 = scalar_lea.vmem [#allocation8], %s674
        %p676 = pneg %p222
        %p677 = pneg %p219
        %s678 = sand.u32 %s33, 1
        %s679 = scalar_lea.sflag [#allocation10], %s678
        %s680 = sand.u32 %s235, 1
        %s681 = scalar_lea.vmem [#allocation9], %s680
        %p682 = pneg %p248
        %p683 = pneg %p245
        %p684 = scmp.lt.s32.totalorder %s38, 1
        %s685 = scalar_select %p684, %s38, 1
        %s686 = smul.addr %s685, 4
        %s687 = smul.addr %s686, 4
        %s688 = scalar_lea.vmem %s8, %s687
        %p689 = pneg %p274
        %p690 = pneg %p271
        %s691 = sand.u32 %s33, 1
        %s692 = scalar_lea.sflag [#allocation10], %s691
        %s693 = sand.u32 %s287, 1
        %s694 = scalar_lea.vmem [#allocation11], %s693
        %p695 = pneg %p300
        %p696 = pneg %p297
        %p697 = scmp.lt.s32.totalorder %s38, 1
        %s698 = scalar_select %p697, %s38, 1
        %s699 = smul.addr %s698, 8
        %s700 = smul.addr %s699, 4
        %s701 = scalar_lea.vmem %s10, %s700
        %p702 = pneg %p326
        %p703 = pneg %p323
        %p704 = scmp.lt.s32.totalorder %s38, 1
        %s705 = scalar_select %p704, %s38, 1
        %s706 = scalar_lea.vmem %s11, %s705
        %p707 = pneg %p352
        %p708 = pneg %p349
        %p709 = scmp.lt.s32.totalorder %s38, 1
        %s710 = scalar_select %p709, %s38, 1
        %s711 = scalar_lea.vmem %s12, %s710
        %p712 = pneg %p378
        %p713 = pneg %p375
        %p714 = scmp.lt.s32.totalorder %s38, 1
        %s715 = scalar_select %p714, %s38, 1
        %s716 = scalar_lea.vmem %s13, %s715
        %p717 = pneg %p404
        %p718 = pneg %p401
        %p719 = pneg %p430
        %p720 = pneg %p427
        %s721 = smul.u32 2, %s37
        %p722 = scmp.lt.s32.totalorder %s37, 0
        %s723 = scalar_select %p722, %s37, 0
        %s724 = smul.addr %s723, 2
        %s725 = scalar_lea.vmem %s1, %s724
        %p726 = scmp.lt.s32.totalorder %s38, 1
        %s727 = scalar_select %p726, %s38, 1
        %s728 = smul.addr %s727, 4
        %s729 = smul.addr %s728, 4
        %s730 = scalar_lea.vmem %s2, %s729
        %p731 = scmp.lt.s32.totalorder %s38, 1
        %s732 = scalar_select %p731, %s38, 1
        %s733 = scalar_lea.vmem %s3, %s732
        %p734 = scmp.lt.s32.totalorder %s38, 1
        %s735 = scalar_select %p734, %s38, 1
        %s736 = smul.addr %s735, 4
        %s737 = smul.addr %s736, 4
        %s738 = scalar_lea.vmem %s4, %s737
        %p739 = scmp.lt.s32.totalorder %s38, 1
        %s740 = scalar_select %p739, %s38, 1
        %s741 = smul.addr %s740, 4
        %s742 = smul.addr %s741, 4
        %s743 = scalar_lea.vmem %s8, %s742
        %p744 = scmp.lt.s32.totalorder %s38, 1
        %s745 = scalar_select %p744, %s38, 1
        %s746 = smul.addr %s745, 8
        %s747 = smul.addr %s746, 4
        %s748 = scalar_lea.vmem %s10, %s747
        %p749 = scmp.lt.s32.totalorder %s38, 1
        %s750 = scalar_select %p749, %s38, 1
        %s751 = scalar_lea.vmem %s11, %s750
        %p752 = scmp.lt.s32.totalorder %s38, 1
        %s753 = scalar_select %p752, %s38, 1
        %s754 = scalar_lea.vmem %s12, %s753
        %p755 = scmp.lt.s32.totalorder %s38, 1
        %s756 = scalar_select %p755, %s38, 1
        %s757 = scalar_lea.vmem %s13, %s756
        %p759 = scmp.eq.s32.totalorder %s38, 0
        // Predicated region
        $region97: #{tpu_custom_call.1} parent=75 // pred_check
          %p760 = pneg %p759
        $region98: #{tpu_custom_call.1} parent=75 // pred_check_branch
          %762 = sbr.rel (%p760) target = $region100
        $region99: #{tpu_custom_call.1} parent=75 // pred_region
          %v763 = vld [vmem:[#allocation3] sm:$0xff]
          %v764 = vld [vmem:[#allocation3 + $0x8] sm:$0xff]
          %vm765 = vcmask 261120
          %766 = vst.msk [vmem:[#allocation2] sm:$0xff] %vm765, %v763
          %767 = vst.msk [vmem:[#allocation2 + $0x8] sm:$0xff] %vm765, %v764
        $region100: #{tpu_custom_call.1} parent=75 // pred_fallthru
          _
        %v768 = vld [vmem:[#allocation2] sm:$0xff]
        %v769 = vld [vmem:[#allocation2 + $0x8] sm:$0xff]
        %v770 = vld [vmem:[%s725] sm:$0x3]
        %v771 = vpack.c.bf16 %v769, %v768
        %v772 = vld [vmem:[%s730] sm:$0xf]
        %v773 = vld [vmem:[%s730 + $0x4] sm:$0xf]
        %v774 = vld [vmem:[%s730 + $0x8] sm:$0xf]
        %v775 = vld [vmem:[%s730 + $0xc] sm:$0xf]
        %v776 = vld [vmem:[%s733] sm:$0x1]
        %v778 = vlaneseq
        %v779 = vshrl.u32 %v778, 7
        %v780 = vsub.s32 0, %v779
        %v781 = vrot.slane %v776, %v780
        %v787 = vunpack.c.l.b16 %v772
        %v788 = vunpack.c.l.b16 %v773
        %v789 = vunpack.c.l.b16 %v774
        %v790 = vunpack.c.l.b16 %v775
        %v791 = vpack.c.b16 %v788, %v787
        %v792 = vpack.c.b16 %v790, %v789
        %vm795 = vcmask 261120
        %v797 = vsel %vm795, %v771, 0
        %799 = vmatprep.subr.bf16.mxu0 0
        %800 = vmatpush1.bf16.msra.mxu0 %v791
        %801 = vmatprep.subr.bf16.mxu0 0
        %802 = vmatpush1.bf16.msra.mxu0 %v792
        %803 = vmatprep.subr.bf16.mxu0 0
        %804 = vmatpush1.bf16.msra.mxu0 0
        %805 = vmatprep.subr.bf16.mxu0 0
        %806 = vmatpush1.bf16.msra.mxu0 0
        %807 = vmatprep.subr.bf16.mxu0 0
        %808 = vmatpush1.bf16.msra.mxu0 0
        %809 = vmatprep.subr.bf16.mxu0 0
        %810 = vmatpush1.bf16.msra.mxu0 0
        %811 = vmatprep.subr.bf16.mxu0 0
        %812 = vmatpush1.bf16.msra.mxu0 0
        %813 = vmatprep.subr.bf16.mxu0 0
        %814 = vmatpush1.bf16.msra.mxu0 0
        %815 = vmatprep.subr.bf16.mxu0 0
        %816 = vmatpush1.bf16.msra.mxu0 0
        %817 = vmatprep.subr.bf16.mxu0 0
        %818 = vmatpush1.bf16.msra.mxu0 0
        %819 = vmatprep.subr.bf16.mxu0 0
        %820 = vmatpush1.bf16.msra.mxu0 0
        %821 = vmatprep.subr.bf16.mxu0 0
        %822 = vmatpush1.bf16.msra.mxu0 0
        %823 = vmatprep.subr.bf16.mxu0 0
        %824 = vmatpush1.bf16.msra.mxu0 0
        %825 = vmatprep.subr.bf16.mxu0 0
        %826 = vmatpush1.bf16.msra.mxu0 0
        %827 = vmatprep.subr.bf16.mxu0 0
        %828 = vmatpush1.bf16.msra.mxu0 0
        %829 = vmatprep.subr.bf16.mxu0 0
        %830 = vmatpush1.bf16.msra.mxu0 0
        %831 = vmatprep.mubr.bf16.mxu0 0
        %832 = vmatmul.mubr.bf16.gmra.mrb[0].mxu0 %v797
        %v833 = vpop.f32.mrb[0].mxu0
        %v834 = vadd.f32 %v781, %v833
        %v835 = vpop.f32.mrb[0].mxu0
        %v836 = vpop.f32.mrb[0].mxu0
        %v837 = vadd.f32 %v781, %v836
        %v838 = vpop.f32.mrb[0].mxu0
        %839 = vdwg.mxu0
        %v840 = vpack.c.bf16 %v834, %v834
        %v841 = vpack.c.bf16 %v837, %v837
        %v844 = vunpack.c.l.s4 1966171168
        %v845 = vunpack.c.0.s8 %v844
        %v846 = vlaneseq
        %v847 = vshrl.u32 %v846, 7
        %v848 = vsub.s32 %v845, %v847
        %v849 = vrot.slane %v770, %v848
        %v850 = vcombine.high %v849, %v849
        %v852 = vunpack.c.l.s4 1966171168
        %v853 = vunpack.c.0.s8 %v852
        %v854 = vlaneseq
        %v855 = vshrl.u32 %v854, 7
        %v856 = vsub.s32 %v853, %v855
        %v857 = vrot.slane %v849, %v856
        %v859 = vunpack.c.l.s4 1966171168
        %v860 = vunpack.c.0.s8 %v859
        %v861 = vlaneseq
        %v862 = vshrl.u32 %v861, 7
        %v863 = vsub.s32 %v860, %v862
        %v864 = vrot.slane %v850, %v863
        %v865 = vlaneseq
        %v866 = vshrl.u32 %v865, 7
        %v867 = vsub.s32 0, %v866
        %v868 = vrot.slane %v857, %v867
        %v869 = vlaneseq
        %v870 = vshrl.u32 %v869, 7
        %v871 = vsub.s32 0, %v870
        %v872 = vrot.slane %v864, %v871
        %876 = vrot.lane.b32.xlu0 %v840, 96
        %v877 = vpop.permute.xlu0 %876
        %vm878 = vcmask 130048
        %v880 = vsel %vm878, %v840, 0
        %v883 = vsel %vm878, %v877, 0
        %885 = vmatprep.subr.bf16.mxu0 0
        %886 = vmatpush1.bf16.xpose.msra.mxu0 %v883
        %887 = vmatprep.subr.bf16.mxu0 0
        %888 = vmatpush1.bf16.xpose.msra.mxu0 0
        %889 = vmatprep.subr.bf16.mxu0 0
        %890 = vmatpush1.bf16.xpose.msra.mxu0 0
        %891 = vmatprep.subr.bf16.mxu0 0
        %892 = vmatpush1.bf16.xpose.msra.mxu0 0
        %893 = vmatprep.subr.bf16.mxu0 0
        %894 = vmatpush1.bf16.xpose.msra.mxu0 0
        %895 = vmatprep.subr.bf16.mxu0 0
        %896 = vmatpush1.bf16.xpose.msra.mxu0 0
        %897 = vmatprep.subr.bf16.mxu0 0
        %898 = vmatpush1.bf16.xpose.msra.mxu0 0
        %899 = vmatprep.subr.bf16.mxu0 0
        %900 = vmatpush1.bf16.xpose.msra.mxu0 0
        %901 = vmatprep.subr.bf16.mxu0 0
        %902 = vmatpush1.bf16.xpose.msra.mxu0 0
        %903 = vmatprep.subr.bf16.mxu0 0
        %904 = vmatpush1.bf16.xpose.msra.mxu0 0
        %905 = vmatprep.subr.bf16.mxu0 0
        %906 = vmatpush1.bf16.xpose.msra.mxu0 0
        %907 = vmatprep.subr.bf16.mxu0 0
        %908 = vmatpush1.bf16.xpose.msra.mxu0 0
        %909 = vmatprep.subr.bf16.mxu0 0
        %910 = vmatpush1.bf16.xpose.msra.mxu0 0
        %911 = vmatprep.subr.bf16.mxu0 0
        %912 = vmatpush1.bf16.xpose.msra.mxu0 0
        %913 = vmatprep.subr.bf16.mxu0 0
        %914 = vmatpush1.bf16.xpose.msra.mxu0 0
        %915 = vmatprep.subr.bf16.mxu0 0
        %916 = vmatpush1.bf16.xpose.msra.mxu0 0
        %917 = vmatprep.mubr.bf16.mxu0 0
        %918 = vmatmul.mubr.bf16.gmra.mrb[0].mxu0 %v880
        %v919 = vpop.f32.mrb[0].mxu0
        %v920 = vadd.f32 %v868, %v919
        %v921 = vpop.f32.mrb[0].mxu0
        %v922 = vpop.f32.mrb[0].mxu0
        %v923 = vpop.f32.mrb[0].mxu0
        %924 = vdwg.mxu0
        %926 = vrot.lane.b32.xlu0 %v841, 96
        %v927 = vpop.permute.xlu0 %926
        %v929 = vsel %vm878, %v841, 0
        %v932 = vsel %vm878, %v927, 0
        %934 = vmatprep.subr.bf16.mxu0 0
        %935 = vmatpush1.bf16.xpose.msra.mxu0 %v932
        %936 = vmatprep.subr.bf16.mxu0 0
        %937 = vmatpush1.bf16.xpose.msra.mxu0 0
        %938 = vmatprep.subr.bf16.mxu0 0
        %939 = vmatpush1.bf16.xpose.msra.mxu0 0
        %940 = vmatprep.subr.bf16.mxu0 0
        %941 = vmatpush1.bf16.xpose.msra.mxu0 0
        %942 = vmatprep.subr.bf16.mxu0 0
        %943 = vmatpush1.bf16.xpose.msra.mxu0 0
        %944 = vmatprep.subr.bf16.mxu0 0
        %945 = vmatpush1.bf16.xpose.msra.mxu0 0
        %946 = vmatprep.subr.bf16.mxu0 0
        %947 = vmatpush1.bf16.xpose.msra.mxu0 0
        %948 = vmatprep.subr.bf16.mxu0 0
        %949 = vmatpush1.bf16.xpose.msra.mxu0 0
        %950 = vmatprep.subr.bf16.mxu0 0
        %951 = vmatpush1.bf16.xpose.msra.mxu0 0
        %952 = vmatprep.subr.bf16.mxu0 0
        %953 = vmatpush1.bf16.xpose.msra.mxu0 0
        %954 = vmatprep.subr.bf16.mxu0 0
        %955 = vmatpush1.bf16.xpose.msra.mxu0 0
        %956 = vmatprep.subr.bf16.mxu0 0
        %957 = vmatpush1.bf16.xpose.msra.mxu0 0
        %958 = vmatprep.subr.bf16.mxu0 0
        %959 = vmatpush1.bf16.xpose.msra.mxu0 0
        %960 = vmatprep.subr.bf16.mxu0 0
        %961 = vmatpush1.bf16.xpose.msra.mxu0 0
        %962 = vmatprep.subr.bf16.mxu0 0
        %963 = vmatpush1.bf16.xpose.msra.mxu0 0
        %964 = vmatprep.subr.bf16.mxu0 0
        %965 = vmatpush1.bf16.xpose.msra.mxu0 0
        %966 = vmatprep.mubr.bf16.mxu0 0
        %967 = vmatmul.mubr.bf16.gmra.mrb[0].mxu0 %v929
        %v968 = vpop.f32.mrb[0].mxu0
        %v969 = vadd.f32 %v872, %v968
        %v970 = vpop.f32.mrb[0].mxu0
        %v971 = vpop.f32.mrb[0].mxu0
        %v972 = vpop.f32.mrb[0].mxu0
        %973 = vdwg.mxu0
        %vm974 = vcmask 64512
        %v975 = vsel %vm974, %v920, -inf
        %976 = vmax.xlane.f32.xlu0 %v975
        %v977 = vpop.xlane.xlu0 %976
        %v978 = vsel %vm974, %v969, -inf
        %979 = vmax.xlane.f32.xlu0 %v978
        %v980 = vpop.xlane.xlu0 %979
        %v981 = vsub.f32 %v920, %v977
        %v982 = vsub.f32 %v969, %v980
        %v983 = vmul.f32 %v981, 1.442695
        %v984 = vpow.pop %v983
        %v985 = vmul.f32 %v982, 1.442695
        %v986 = vpow.pop %v985
        %v987 = vsel %vm974, %v984, 0.0
        %988 = vadd.xlane.f32.xlu0 %v987
        %v989 = vpop.xlane.xlu0 %988
        %v990 = vsel %vm974, %v986, 0.0
        %991 = vadd.xlane.f32.xlu0 %v990
        %v992 = vpop.xlane.xlu0 %991
        %v993 = vrcp.pop %v989
        %v994 = vrcp.pop %v992
        %v995 = vmul.f32 %v984, %v993
        %v996 = vmul.f32 %v986, %v994
        %v997 = vpack.c.bf16 %v995, %v995
        %v998 = vpack.c.bf16 %v996, %v996
        %999 = vrot.lane.b32.xlu0 %v840, 64
        %v1000 = vpop.permute.xlu0 %999
        %v1002 = vsel %vm974, %v997, 0
        %vm1004 = vcmask 1043456
        %v1006 = vsel %vm1004, %v1000, 0
        %1008 = vmatprep.subr.bf16.mxu0 0
        %1009 = vmatpush1.bf16.msra.mxu0 %v1006
        %1010 = vmatprep.subr.bf16.mxu0 0
        %1011 = vmatpush1.bf16.msra.mxu0 0
        %1012 = vmatprep.subr.bf16.mxu0 0
        %1013 = vmatpush1.bf16.msra.mxu0 0
        %1014 = vmatprep.subr.bf16.mxu0 0
        %1015 = vmatpush1.bf16.msra.mxu0 0
        %1016 = vmatprep.subr.bf16.mxu0 0
        %1017 = vmatpush1.bf16.msra.mxu0 0
        %1018 = vmatprep.subr.bf16.mxu0 0
        %1019 = vmatpush1.bf16.msra.mxu0 0
        %1020 = vmatprep.subr.bf16.mxu0 0
        %1021 = vmatpush1.bf16.msra.mxu0 0
        %1022 = vmatprep.subr.bf16.mxu0 0
        %1023 = vmatpush1.bf16.msra.mxu0 0
        %1024 = vmatprep.subr.bf16.mxu0 0
        %1025 = vmatpush1.bf16.msra.mxu0 0
        %1026 = vmatprep.subr.bf16.mxu0 0
        %1027 = vmatpush1.bf16.msra.mxu0 0
        %1028 = vmatprep.subr.bf16.mxu0 0
        %1029 = vmatpush1.bf16.msra.mxu0 0
        %1030 = vmatprep.subr.bf16.mxu0 0
        %1031 = vmatpush1.bf16.msra.mxu0 0
        %1032 = vmatprep.subr.bf16.mxu0 0
        %1033 = vmatpush1.bf16.msra.mxu0 0
        %1034 = vmatprep.subr.bf16.mxu0 0
        %1035 = vmatpush1.bf16.msra.mxu0 0
        %1036 = vmatprep.subr.bf16.mxu0 0
        %1037 = vmatpush1.bf16.msra.mxu0 0
        %1038 = vmatprep.subr.bf16.mxu0 0
        %1039 = vmatpush1.bf16.msra.mxu0 0
        %1040 = vmatprep.mubr.bf16.mxu0 0
        %1041 = vmatmul.mubr.bf16.gmra.mrb[0].mxu0 %v1002
        %v1042 = vpop.f32.mrb[0].mxu0
        %v1043 = vadd.f32 0.0, %v1042
        %v1044 = vpop.f32.mrb[0].mxu0
        %v1045 = vpop.f32.mrb[0].mxu0
        %v1046 = vpop.f32.mrb[0].mxu0
        %1047 = vdwg.mxu0
        %1048 = vrot.lane.b32.xlu0 %v841, 64
        %v1049 = vpop.permute.xlu0 %1048
        %v1051 = vsel %vm974, %v998, 0
        %v1054 = vsel %vm1004, %v1049, 0
        %1056 = vmatprep.subr.bf16.mxu0 0
        %1057 = vmatpush1.bf16.msra.mxu0 %v1054
        %1058 = vmatprep.subr.bf16.mxu0 0
        %1059 = vmatpush1.bf16.msra.mxu0 0
        %1060 = vmatprep.subr.bf16.mxu0 0
        %1061 = vmatpush1.bf16.msra.mxu0 0
        %1062 = vmatprep.subr.bf16.mxu0 0
        %1063 = vmatpush1.bf16.msra.mxu0 0
        %1064 = vmatprep.subr.bf16.mxu0 0
        %1065 = vmatpush1.bf16.msra.mxu0 0
        %1066 = vmatprep.subr.bf16.mxu0 0
        %1067 = vmatpush1.bf16.msra.mxu0 0
        %1068 = vmatprep.subr.bf16.mxu0 0
        %1069 = vmatpush1.bf16.msra.mxu0 0
        %1070 = vmatprep.subr.bf16.mxu0 0
        %1071 = vmatpush1.bf16.msra.mxu0 0
        %1072 = vmatprep.subr.bf16.mxu0 0
        %1073 = vmatpush1.bf16.msra.mxu0 0
        %1074 = vmatprep.subr.bf16.mxu0 0
        %1075 = vmatpush1.bf16.msra.mxu0 0
        %1076 = vmatprep.subr.bf16.mxu0 0
        %1077 = vmatpush1.bf16.msra.mxu0 0
        %1078 = vmatprep.subr.bf16.mxu0 0
        %1079 = vmatpush1.bf16.msra.mxu0 0
        %1080 = vmatprep.subr.bf16.mxu0 0
        %1081 = vmatpush1.bf16.msra.mxu0 0
        %1082 = vmatprep.subr.bf16.mxu0 0
        %1083 = vmatpush1.bf16.msra.mxu0 0
        %1084 = vmatprep.subr.bf16.mxu0 0
        %1085 = vmatpush1.bf16.msra.mxu0 0
        %1086 = vmatprep.subr.bf16.mxu0 0
        %1087 = vmatpush1.bf16.msra.mxu0 0
        %1088 = vmatprep.mubr.bf16.mxu0 0
        %1089 = vmatmul.mubr.bf16.gmra.mrb[0].mxu0 %v1051
        %v1090 = vpop.f32.mrb[0].mxu0
        %v1091 = vadd.f32 0.0, %v1090
        %v1092 = vpop.f32.mrb[0].mxu0
        %v1093 = vpop.f32.mrb[0].mxu0
        %v1094 = vpop.f32.mrb[0].mxu0
        %1095 = vdwg.mxu0
        %1096 = vrot.lane.b32.xlu0 %v840, 112
        %v1097 = vpop.permute.xlu0 %1096
        %1098 = vrot.lane.b32.xlu0 %v840, 80
        %v1099 = vpop.permute.xlu0 %1098
        %v1101 = vsel %vm878, %v1097, 0
        %v1104 = vsel %vm878, %v1099, 0
        %1106 = vmatprep.subr.bf16.mxu0 0
        %1107 = vmatpush1.bf16.xpose.msra.mxu0 %v1104
        %1108 = vmatprep.subr.bf16.mxu0 0
        %1109 = vmatpush1.bf16.xpose.msra.mxu0 0
        %1110 = vmatprep.subr.bf16.mxu0 0
        %1111 = vmatpush1.bf16.xpose.msra.mxu0 0
        %1112 = vmatprep.subr.bf16.mxu0 0
        %1113 = vmatpush1.bf16.xpose.msra.mxu0 0
        %1114 = vmatprep.subr.bf16.mxu0 0
        %1115 = vmatpush1.bf16.xpose.msra.mxu0 0
        %1116 = vmatprep.subr.bf16.mxu0 0
        %1117 = vmatpush1.bf16.xpose.msra.mxu0 0
        %1118 = vmatprep.subr.bf16.mxu0 0
        %1119 = vmatpush1.bf16.xpose.msra.mxu0 0
        %1120 = vmatprep.subr.bf16.mxu0 0
        %1121 = vmatpush1.bf16.xpose.msra.mxu0 0
        %1122 = vmatprep.subr.bf16.mxu0 0
        %1123 = vmatpush1.bf16.xpose.msra.mxu0 0
        %1124 = vmatprep.subr.bf16.mxu0 0
        %1125 = vmatpush1.bf16.xpose.msra.mxu0 0
        %1126 = vmatprep.subr.bf16.mxu0 0
        %1127 = vmatpush1.bf16.xpose.msra.mxu0 0
        %1128 = vmatprep.subr.bf16.mxu0 0
        %1129 = vmatpush1.bf16.xpose.msra.mxu0 0
        %1130 = vmatprep.subr.bf16.mxu0 0
        %1131 = vmatpush1.bf16.xpose.msra.mxu0 0
        %1132 = vmatprep.subr.bf16.mxu0 0
        %1133 = vmatpush1.bf16.xpose.msra.mxu0 0
        %1134 = vmatprep.subr.bf16.mxu0 0
        %1135 = vmatpush1.bf16.xpose.msra.mxu0 0
        %1136 = vmatprep.subr.bf16.mxu0 0
        %1137 = vmatpush1.bf16.xpose.msra.mxu0 0
        %1138 = vmatprep.mubr.bf16.mxu0 0
        %1139 = vmatmul.mubr.bf16.gmra.mrb[0].mxu0 %v1101
        %v1140 = vpop.f32.mrb[0].mxu0
        %v1141 = vadd.f32 %v868, %v1140
        %v1142 = vpop.f32.mrb[0].mxu0
        %v1143 = vpop.f32.mrb[0].mxu0
        %v1144 = vpop.f32.mrb[0].mxu0
        %1145 = vdwg.mxu0
        %1146 = vrot.lane.b32.xlu0 %v841, 112
        %v1147 = vpop.permute.xlu0 %1146
        %1148 = vrot.lane.b32.xlu0 %v841, 80
        %v1149 = vpop.permute.xlu0 %1148
        %v1151 = vsel %vm878, %v1147, 0
        %v1154 = vsel %vm878, %v1149, 0
        %1156 = vmatprep.subr.bf16.mxu0 0
        %1157 = vmatpush1.bf16.xpose.msra.mxu0 %v1154
        %1158 = vmatprep.subr.bf16.mxu0 0
        %1159 = vmatpush1.bf16.xpose.msra.mxu0 0
        %1160 = vmatprep.subr.bf16.mxu0 0
        %1161 = vmatpush1.bf16.xpose.msra.mxu0 0
        %1162 = vmatprep.subr.bf16.mxu0 0
        %1163 = vmatpush1.bf16.xpose.msra.mxu0 0
        %1164 = vmatprep.subr.bf16.mxu0 0
        %1165 = vmatpush1.bf16.xpose.msra.mxu0 0
        %1166 = vmatprep.subr.bf16.mxu0 0
        %1167 = vmatpush1.bf16.xpose.msra.mxu0 0
        %1168 = vmatprep.subr.bf16.mxu0 0
        %1169 = vmatpush1.bf16.xpose.msra.mxu0 0
        %1170 = vmatprep.subr.bf16.mxu0 0
        %1171 = vmatpush1.bf16.xpose.msra.mxu0 0
        %1172 = vmatprep.subr.bf16.mxu0 0
        %1173 = vmatpush1.bf16.xpose.msra.mxu0 0
        %1174 = vmatprep.subr.bf16.mxu0 0
        %1175 = vmatpush1.bf16.xpose.msra.mxu0 0
        %1176 = vmatprep.subr.bf16.mxu0 0
        %1177 = vmatpush1.bf16.xpose.msra.mxu0 0
        %1178 = vmatprep.subr.bf16.mxu0 0
        %1179 = vmatpush1.bf16.xpose.msra.mxu0 0
        %1180 = vmatprep.subr.bf16.mxu0 0
        %1181 = vmatpush1.bf16.xpose.msra.mxu0 0
        %1182 = vmatprep.subr.bf16.mxu0 0
        %1183 = vmatpush1.bf16.xpose.msra.mxu0 0
        %1184 = vmatprep.subr.bf16.mxu0 0
        %1185 = vmatpush1.bf16.xpose.msra.mxu0 0
        %1186 = vmatprep.subr.bf16.mxu0 0
        %1187 = vmatpush1.bf16.xpose.msra.mxu0 0
        %1188 = vmatprep.mubr.bf16.mxu0 0
        %1189 = vmatmul.mubr.bf16.gmra.mrb[0].mxu0 %v1151
        %v1190 = vpop.f32.mrb[0].mxu0
        %v1191 = vadd.f32 %v872, %v1190
        %v1192 = vpop.f32.mrb[0].mxu0
        %v1193 = vpop.f32.mrb[0].mxu0
        %v1194 = vpop.f32.mrb[0].mxu0
        %1195 = vdwg.mxu0
        %v1196 = vsel %vm974, %v1141, -inf
        %1197 = vmax.xlane.f32.xlu0 %v1196
        %v1198 = vpop.xlane.xlu0 %1197
        %v1199 = vsel %vm974, %v1191, -inf
        %1200 = vmax.xlane.f32.xlu0 %v1199
        %v1201 = vpop.xlane.xlu0 %1200
        %v1202 = vsub.f32 %v1141, %v1198
        %v1203 = vsub.f32 %v1191, %v1201
        %v1204 = vmul.f32 %v1202, 1.442695
        %v1205 = vpow.pop %v1204
        %v1206 = vmul.f32 %v1203, 1.442695
        %v1207 = vpow.pop %v1206
        %v1208 = vsel %vm974, %v1205, 0.0
        %1209 = vadd.xlane.f32.xlu0 %v1208
        %v1210 = vpop.xlane.xlu0 %1209
        %v1211 = vsel %vm974, %v1207, 0.0
        %1212 = vadd.xlane.f32.xlu0 %v1211
        %v1213 = vpop.xlane.xlu0 %1212
        %v1214 = vrcp.pop %v1210
        %v1215 = vrcp.pop %v1213
        %v1216 = vmul.f32 %v1205, %v1214
        %v1217 = vmul.f32 %v1207, %v1215
        %v1218 = vpack.c.bf16 %v1216, %v1216
        %v1219 = vpack.c.bf16 %v1217, %v1217
        %1220 = vrot.lane.b32.xlu0 %v840, 48
        %v1221 = vpop.permute.xlu0 %1220
        %v1223 = vsel %vm974, %v1218, 0
        %v1226 = vsel %vm1004, %v1221, 0
        %1228 = vmatprep.subr.bf16.mxu0 0
        %1229 = vmatpush1.bf16.msra.mxu0 %v1226
        %1230 = vmatprep.subr.bf16.mxu0 0
        %1231 = vmatpush1.bf16.msra.mxu0 0
        %1232 = vmatprep.subr.bf16.mxu0 0
        %1233 = vmatpush1.bf16.msra.mxu0 0
        %1234 = vmatprep.subr.bf16.mxu0 0
        %1235 = vmatpush1.bf16.msra.mxu0 0
        %1236 = vmatprep.subr.bf16.mxu0 0
        %1237 = vmatpush1.bf16.msra.mxu0 0
        %1238 = vmatprep.subr.bf16.mxu0 0
        %1239 = vmatpush1.bf16.msra.mxu0 0
        %1240 = vmatprep.subr.bf16.mxu0 0
        %1241 = vmatpush1.bf16.msra.mxu0 0
        %1242 = vmatprep.subr.bf16.mxu0 0
        %1243 = vmatpush1.bf16.msra.mxu0 0
        %1244 = vmatprep.subr.bf16.mxu0 0
        %1245 = vmatpush1.bf16.msra.mxu0 0
        %1246 = vmatprep.subr.bf16.mxu0 0
        %1247 = vmatpush1.bf16.msra.mxu0 0
        %1248 = vmatprep.subr.bf16.mxu0 0
        %1249 = vmatpush1.bf16.msra.mxu0 0
        %1250 = vmatprep.subr.bf16.mxu0 0
        %1251 = vmatpush1.bf16.msra.mxu0 0
        %1252 = vmatprep.subr.bf16.mxu0 0
        %1253 = vmatpush1.bf16.msra.mxu0 0
        %1254 = vmatprep.subr.bf16.mxu0 0
        %1255 = vmatpush1.bf16.msra.mxu0 0
        %1256 = vmatprep.subr.bf16.mxu0 0
        %1257 = vmatpush1.bf16.msra.mxu0 0
        %1258 = vmatprep.subr.bf16.mxu0 0
        %1259 = vmatpush1.bf16.msra.mxu0 0
        %1260 = vmatprep.mubr.bf16.mxu0 0
        %1261 = vmatmul.mubr.bf16.gmra.mrb[0].mxu0 %v1223
        %v1262 = vpop.f32.mrb[0].mxu0
        %v1263 = vadd.f32 0.0, %v1262
        %v1264 = vpop.f32.mrb[0].mxu0
        %v1265 = vpop.f32.mrb[0].mxu0
        %v1266 = vpop.f32.mrb[0].mxu0
        %1267 = vdwg.mxu0
        %1268 = vrot.lane.b32.xlu0 %v841, 48
        %v1269 = vpop.permute.xlu0 %1268
        %v1271 = vsel %vm974, %v1219, 0
        %v1274 = vsel %vm1004, %v1269, 0
        %1276 = vmatprep.subr.bf16.mxu0 0
        %1277 = vmatpush1.bf16.msra.mxu0 %v1274
        %1278 = vmatprep.subr.bf16.mxu0 0
        %1279 = vmatpush1.bf16.msra.mxu0 0
        %1280 = vmatprep.subr.bf16.mxu0 0
        %1281 = vmatpush1.bf16.msra.mxu0 0
        %1282 = vmatprep.subr.bf16.mxu0 0
        %1283 = vmatpush1.bf16.msra.mxu0 0
        %1284 = vmatprep.subr.bf16.mxu0 0
        %1285 = vmatpush1.bf16.msra.mxu0 0
        %1286 = vmatprep.subr.bf16.mxu0 0
        %1287 = vmatpush1.bf16.msra.mxu0 0
        %1288 = vmatprep.subr.bf16.mxu0 0
        %1289 = vmatpush1.bf16.msra.mxu0 0
        %1290 = vmatprep.subr.bf16.mxu0 0
        %1291 = vmatpush1.bf16.msra.mxu0 0
        %1292 = vmatprep.subr.bf16.mxu0 0
        %1293 = vmatpush1.bf16.msra.mxu0 0
        %1294 = vmatprep.subr.bf16.mxu0 0
        %1295 = vmatpush1.bf16.msra.mxu0 0
        %1296 = vmatprep.subr.bf16.mxu0 0
        %1297 = vmatpush1.bf16.msra.mxu0 0
        %1298 = vmatprep.subr.bf16.mxu0 0
        %1299 = vmatpush1.bf16.msra.mxu0 0
        %1300 = vmatprep.subr.bf16.mxu0 0
        %1301 = vmatpush1.bf16.msra.mxu0 0
        %1302 = vmatprep.subr.bf16.mxu0 0
        %1303 = vmatpush1.bf16.msra.mxu0 0
        %1304 = vmatprep.subr.bf16.mxu0 0
        %1305 = vmatpush1.bf16.msra.mxu0 0
        %1306 = vmatprep.subr.bf16.mxu0 0
        %1307 = vmatpush1.bf16.msra.mxu0 0
        %1308 = vmatprep.mubr.bf16.mxu0 0
        %1309 = vmatmul.mubr.bf16.gmra.mrb[0].mxu0 %v1271
        %v1310 = vpop.f32.mrb[0].mxu0
        %v1311 = vadd.f32 0.0, %v1310
        %v1312 = vpop.f32.mrb[0].mxu0
        %v1313 = vpop.f32.mrb[0].mxu0
        %v1314 = vpop.f32.mrb[0].mxu0
        %1315 = vdwg.mxu0
        %v1316 = vld [vmem:[%s738] sm:$0xf]
        %v1317 = vld [vmem:[%s738 + $0x4] sm:$0xf]
        %v1318 = vld [vmem:[%s738 + $0x8] sm:$0xf]
        %v1319 = vld [vmem:[%s738 + $0xc] sm:$0xf]
        %p1320 = scmp.lt.s32.totalorder %s38, 1
        // Predicated region
        $region101: #{tpu_custom_call.1} parent=75 // pred_check
          %p1321 = pneg %p1320
        $region102: #{tpu_custom_call.1} parent=75 // pred_check_branch
          %1323 = sbr.rel (%p1321) target = $region104
        $region103: #{tpu_custom_call.1} parent=75 // pred_region
          %v1324 = vld [vmem:[%s610] sm:$0x1]
          %v1325 = vpack.c.bf16 %v1091, %v1043
          %v1326 = vpack.c.bf16 %v1311, %v1263
          %v1329 = vunpack.c.l.b16 %v1318
          %v1330 = vunpack.c.l.b16 %v1319
          %v1331 = vpack.c.b16 %v1330, %v1329
          %v1334 = vsel %vm878, %v1326, 0
          %1336 = vmatprep.subr.bf16.mxu0 0
          %1337 = vmatpush1.bf16.msra.mxu0 %v1331
          %1338 = vmatprep.subr.bf16.mxu0 0
          %1339 = vmatpush1.bf16.msra.mxu0 0
          %1340 = vmatprep.subr.bf16.mxu0 0
          %1341 = vmatpush1.bf16.msra.mxu0 0
          %1342 = vmatprep.subr.bf16.mxu0 0
          %1343 = vmatpush1.bf16.msra.mxu0 0
          %1344 = vmatprep.subr.bf16.mxu0 0
          %1345 = vmatpush1.bf16.msra.mxu0 0
          %1346 = vmatprep.subr.bf16.mxu0 0
          %1347 = vmatpush1.bf16.msra.mxu0 0
          %1348 = vmatprep.subr.bf16.mxu0 0
          %1349 = vmatpush1.bf16.msra.mxu0 0
          %1350 = vmatprep.subr.bf16.mxu0 0
          %1351 = vmatpush1.bf16.msra.mxu0 0
          %1352 = vmatprep.subr.bf16.mxu0 0
          %1353 = vmatpush1.bf16.msra.mxu0 0
          %1354 = vmatprep.subr.bf16.mxu0 0
          %1355 = vmatpush1.bf16.msra.mxu0 0
          %1356 = vmatprep.subr.bf16.mxu0 0
          %1357 = vmatpush1.bf16.msra.mxu0 0
          %1358 = vmatprep.subr.bf16.mxu0 0
          %1359 = vmatpush1.bf16.msra.mxu0 0
          %1360 = vmatprep.subr.bf16.mxu0 0
          %1361 = vmatpush1.bf16.msra.mxu0 0
          %1362 = vmatprep.subr.bf16.mxu0 0
          %1363 = vmatpush1.bf16.msra.mxu0 0
          %1364 = vmatprep.subr.bf16.mxu0 0
          %1365 = vmatpush1.bf16.msra.mxu0 0
          %1366 = vmatprep.subr.bf16.mxu0 0
          %1367 = vmatpush1.bf16.msra.mxu0 0
          %1368 = vmatprep.mubr.bf16.mxu0 0
          %1369 = vmatmul.mubr.bf16.gmra.mrb[0].mxu0 %v1334
          %v1370 = vpop.f32.mrb[0].mxu0
          %v1371 = vadd.f32 0.0, %v1370
          %v1372 = vpop.f32.mrb[0].mxu0
          %v1373 = vpop.f32.mrb[0].mxu0
          %v1374 = vadd.f32 0.0, %v1373
          %v1375 = vpop.f32.mrb[0].mxu0
          %1376 = vdwg.mxu0
          %v1379 = vunpack.c.l.b16 %v1316
          %v1380 = vunpack.c.l.b16 %v1317
          %v1381 = vpack.c.b16 %v1380, %v1379
          %v1384 = vsel %vm878, %v1325, 0
          %1386 = vmatprep.subr.bf16.mxu0 0
          %1387 = vmatpush1.bf16.msra.mxu0 %v1381
          %1388 = vmatprep.subr.bf16.mxu0 0
          %1389 = vmatpush1.bf16.msra.mxu0 0
          %1390 = vmatprep.subr.bf16.mxu0 0
          %1391 = vmatpush1.bf16.msra.mxu0 0
          %1392 = vmatprep.subr.bf16.mxu0 0
          %1393 = vmatpush1.bf16.msra.mxu0 0
          %1394 = vmatprep.subr.bf16.mxu0 0
          %1395 = vmatpush1.bf16.msra.mxu0 0
          %1396 = vmatprep.subr.bf16.mxu0 0
          %1397 = vmatpush1.bf16.msra.mxu0 0
          %1398 = vmatprep.subr.bf16.mxu0 0
          %1399 = vmatpush1.bf16.msra.mxu0 0
          %1400 = vmatprep.subr.bf16.mxu0 0
          %1401 = vmatpush1.bf16.msra.mxu0 0
          %1402 = vmatprep.subr.bf16.mxu0 0
          %1403 = vmatpush1.bf16.msra.mxu0 0
          %1404 = vmatprep.subr.bf16.mxu0 0
          %1405 = vmatpush1.bf16.msra.mxu0 0
          %1406 = vmatprep.subr.bf16.mxu0 0
          %1407 = vmatpush1.bf16.msra.mxu0 0
          %1408 = vmatprep.subr.bf16.mxu0 0
          %1409 = vmatpush1.bf16.msra.mxu0 0
          %1410 = vmatprep.subr.bf16.mxu0 0
          %1411 = vmatpush1.bf16.msra.mxu0 0
          %1412 = vmatprep.subr.bf16.mxu0 0
          %1413 = vmatpush1.bf16.msra.mxu0 0
          %1414 = vmatprep.subr.bf16.mxu0 0
          %1415 = vmatpush1.bf16.msra.mxu0 0
          %1416 = vmatprep.subr.bf16.mxu0 0
          %1417 = vmatpush1.bf16.msra.mxu0 0
          %1418 = vmatprep.mubr.bf16.mxu0 0
          %1419 = vmatmul.mubr.bf16.gmra.mrb[0].mxu0 %v1384
          %v1420 = vpop.f32.mrb[0].mxu0
          %v1421 = vadd.f32 %v1371, %v1420
          %v1422 = vpop.f32.mrb[0].mxu0
          %v1423 = vpop.f32.mrb[0].mxu0
          %v1424 = vadd.f32 %v1374, %v1423
          %v1425 = vpop.f32.mrb[0].mxu0
          %1426 = vdwg.mxu0
          %v1428 = vlaneseq
          %v1429 = vshrl.u32 %v1428, 7
          %v1430 = vsub.s32 0, %v1429
          %v1431 = vrot.slane %v1324, %v1430
          %v1433 = vadd.f32 %v1431, %v1421
          %v1434 = vadd.f32 %v1431, %v1424
          %v1435 = vadd.f32 %v768, %v1433
          %v1436 = vadd.f32 %v769, %v1434
          %v1437 = vld [vmem:[%s618] sm:$0x1]
          %v1438 = vld [vmem:[%s626] sm:$0x1]
          %v1439 = vsel %vm795, %v1435, 0.0
          %1440 = vadd.xlane.f32.xlu0 %v1439
          %v1441 = vpop.xlane.xlu0 %1440
          %v1442 = vsel %vm795, %v1436, 0.0
          %1443 = vadd.xlane.f32.xlu0 %v1442
          %v1444 = vpop.xlane.xlu0 %1443
          %v1445 = vrcp.pop 32.0
          %v1446 = vmul.f32 %v1441, %v1445
          %v1447 = vmul.f32 %v1444, %v1445
          %v1448 = vsub.f32 %v1435, %v1446
          %v1449 = vsub.f32 %v1436, %v1447
          %v1450 = vmul.f32 %v1448, %v1448
          %v1451 = vmul.f32 %v1449, %v1449
          %v1452 = vsel %vm795, %v1450, 0.0
          %1453 = vadd.xlane.f32.xlu0 %v1452
          %v1454 = vpop.xlane.xlu0 %1453
          %v1455 = vsel %vm795, %v1451, 0.0
          %1456 = vadd.xlane.f32.xlu0 %v1455
          %v1457 = vpop.xlane.xlu0 %1456
          %v1458 = vmul.f32 %v1454, %v1445
          %v1459 = vmul.f32 %v1457, %v1445
          %v1460 = vadd.f32 %v1458, 1e-12
          %v1461 = vadd.f32 %v1459, 1e-12
          %v1462 = vrsqrt.pop %v1460
          %v1463 = vrsqrt.pop %v1461
          %v1464 = vmul.f32 %v1448, %v1462
          %v1465 = vmul.f32 %v1449, %v1463
          %v1467 = vlaneseq
          %v1468 = vshrl.u32 %v1467, 7
          %v1469 = vsub.s32 0, %v1468
          %v1470 = vrot.slane %v1437, %v1469
          %v1472 = vmul.f32 %v1464, %v1470
          %v1473 = vmul.f32 %v1465, %v1470
          %v1475 = vlaneseq
          %v1476 = vshrl.u32 %v1475, 7
          %v1477 = vsub.s32 0, %v1476
          %v1478 = vrot.slane %v1438, %v1477
          %v1480 = vadd.f32 %v1472, %v1478
          %v1481 = vadd.f32 %v1473, %v1478
          %v1482 = vpack.c.bf16 %v1481, %v1480
          %v1483 = vld [vmem:[%s743] sm:$0xf]
          %v1484 = vld [vmem:[%s743 + $0x4] sm:$0xf]
          %v1485 = vld [vmem:[%s743 + $0x8] sm:$0xf]
          %v1486 = vld [vmem:[%s743 + $0xc] sm:$0xf]
          %v1487 = vld [vmem:[%s634] sm:$0x1]
          %v1489 = vlaneseq
          %v1490 = vshrl.u32 %v1489, 7
          %v1491 = vsub.s32 0, %v1490
          %v1492 = vrot.slane %v1487, %v1491
          %v1498 = vunpack.c.l.b16 %v1483
          %v1499 = vunpack.c.l.b16 %v1484
          %v1500 = vunpack.c.l.b16 %v1485
          %v1501 = vunpack.c.l.b16 %v1486
          %v1502 = vpack.c.b16 %v1499, %v1498
          %v1503 = vpack.c.b16 %v1501, %v1500
          %v1507 = vsel %vm795, %v1482, 0
          %1509 = vmatprep.subr.bf16.mxu0 0
          %1510 = vmatpush1.bf16.msra.mxu0 %v1502
          %1511 = vmatprep.subr.bf16.mxu0 0
          %1512 = vmatpush1.bf16.msra.mxu0 %v1503
          %1513 = vmatprep.subr.bf16.mxu0 0
          %1514 = vmatpush1.bf16.msra.mxu0 0
          %1515 = vmatprep.subr.bf16.mxu0 0
          %1516 = vmatpush1.bf16.msra.mxu0 0
          %1517 = vmatprep.subr.bf16.mxu0 0
          %1518 = vmatpush1.bf16.msra.mxu0 0
          %1519 = vmatprep.subr.bf16.mxu0 0
          %1520 = vmatpush1.bf16.msra.mxu0 0
          %1521 = vmatprep.subr.bf16.mxu0 0
          %1522 = vmatpush1.bf16.msra.mxu0 0
          %1523 = vmatprep.subr.bf16.mxu0 0
          %1524 = vmatpush1.bf16.msra.mxu0 0
          %1525 = vmatprep.subr.bf16.mxu0 0
          %1526 = vmatpush1.bf16.msra.mxu0 0
          %1527 = vmatprep.subr.bf16.mxu0 0
          %1528 = vmatpush1.bf16.msra.mxu0 0
          %1529 = vmatprep.subr.bf16.mxu0 0
          %1530 = vmatpush1.bf16.msra.mxu0 0
          %1531 = vmatprep.subr.bf16.mxu0 0
          %1532 = vmatpush1.bf16.msra.mxu0 0
          %1533 = vmatprep.subr.bf16.mxu0 0
          %1534 = vmatpush1.bf16.msra.mxu0 0
          %1535 = vmatprep.subr.bf16.mxu0 0
          %1536 = vmatpush1.bf16.msra.mxu0 0
          %1537 = vmatprep.subr.bf16.mxu0 0
          %1538 = vmatpush1.bf16.msra.mxu0 0
          %1539 = vmatprep.subr.bf16.mxu0 0
          %1540 = vmatpush1.bf16.msra.mxu0 0
          %1541 = vmatprep.mubr.bf16.mxu0 0
          %1542 = vmatmul.mubr.bf16.gmra.mrb[0].mxu0 %v1507
          %v1543 = vpop.f32.mrb[0].mxu0
          %v1544 = vadd.f32 %v1492, %v1543
          %v1545 = vpop.f32.mrb[0].mxu0
          %v1546 = vpop.f32.mrb[0].mxu0
          %v1547 = vadd.f32 %v1492, %v1546
          %v1548 = vpop.f32.mrb[0].mxu0
          %1549 = vdwg.mxu0
          %v1550 = vmul.f32 %v1544, 0.5
          %v1551 = vmul.f32 %v1547, 0.5
          %v1552 = vmul.f32 %v1544, 0.70710677
          %v1553 = vmul.f32 %v1547, 0.70710677
          %v1554 = vand.u32 2147483647, %v1552
          %v1555 = vand.u32 2147483647, %v1553
          %v1556 = vmul.f32 %v1554, 0.3275911
          %v1557 = vmul.f32 %v1555, 0.3275911
          %v1558 = vadd.f32 %v1556, 1.0
          %v1559 = vadd.f32 %v1557, 1.0
          %v1560 = vrcp.pop %v1558
          %v1561 = vmul.f32 1.0, %v1560
          %v1562 = vrcp.pop %v1559
          %v1563 = vmul.f32 1.0, %v1562
          %v1564 = vmul.f32 %v1561, 1.0614054
          %v1565 = vmul.f32 %v1563, 1.0614054
          %v1566 = vadd.f32 %v1564, -1.4531521
          %v1567 = vadd.f32 %v1565, -1.4531521
          %v1568 = vmul.f32 %v1566, %v1561
          %v1569 = vmul.f32 %v1567, %v1563
          %v1570 = vadd.f32 %v1568, 1.4214138
          %v1571 = vadd.f32 %v1569, 1.4214138
          %v1572 = vmul.f32 %v1570, %v1561
          %v1573 = vmul.f32 %v1571, %v1563
          %v1574 = vadd.f32 %v1572, -0.28449672
          %v1575 = vadd.f32 %v1573, -0.28449672
          %v1576 = vmul.f32 %v1574, %v1561
          %v1577 = vmul.f32 %v1575, %v1563
          %v1578 = vadd.f32 %v1576, 0.2548296
          %v1579 = vadd.f32 %v1577, 0.2548296
          %v1580 = vmul.f32 %v1578, %v1561
          %v1581 = vmul.f32 %v1579, %v1563
          %v1582 = vsub.f32 0.0, %v1554
          %v1583 = vsub.f32 0.0, %v1555
          %v1584 = vmul.f32 %v1582, %v1554
          %v1585 = vmul.f32 %v1583, %v1555
          %v1586 = vmul.f32 %v1584, 1.442695
          %v1587 = vpow.pop %v1586
          %v1588 = vmul.f32 %v1585, 1.442695
          %v1589 = vpow.pop %v1588
          %v1590 = vmul.f32 %v1580, %v1587
          %v1591 = vmul.f32 %v1581, %v1589
          %v1592 = vsub.f32 1.0, %v1590
          %v1593 = vsub.f32 1.0, %v1591
          %vm1594 = vcmp.ge.f32.partialorder %v1552, 0.0
          %vm1595 = vcmp.ge.f32.partialorder %v1553, 0.0
          %v1596 = vsub.f32 0.0, %v1592
          %v1597 = vsub.f32 0.0, %v1593
          %v1598 = vsel %vm1594, %v1592, %v1596
          %v1599 = vsel %vm1595, %v1593, %v1597
          %v1600 = vadd.f32 %v1598, 1.0
          %v1601 = vadd.f32 %v1599, 1.0
          %v1602 = vmul.f32 %v1550, %v1600
          %v1603 = vmul.f32 %v1551, %v1601
          %v1604 = vpack.c.bf16 %v1603, %v1602
          %v1605 = vld [vmem:[%s748] sm:$0xf]
          %v1606 = vld [vmem:[%s748 + $0x4] sm:$0xf]
          %v1607 = vld [vmem:[%s748 + $0x8] sm:$0xf]
          %v1608 = vld [vmem:[%s748 + $0xc] sm:$0xf]
          %v1609 = vld [vmem:[%s748 + $0x10] sm:$0xf]
          %v1610 = vld [vmem:[%s748 + $0x14] sm:$0xf]
          %v1611 = vld [vmem:[%s748 + $0x18] sm:$0xf]
          %v1612 = vld [vmem:[%s748 + $0x1c] sm:$0xf]
          %v1613 = vld [vmem:[%s751] sm:$0x1]
          %v1615 = vlaneseq
          %v1616 = vshrl.u32 %v1615, 7
          %v1617 = vsub.s32 0, %v1616
          %v1618 = vrot.slane %v1613, %v1617
          %v1628 = vunpack.c.l.b16 %v1605
          %v1629 = vunpack.c.l.b16 %v1606
          %v1630 = vunpack.c.l.b16 %v1607
          %v1631 = vunpack.c.l.b16 %v1608
          %v1632 = vunpack.c.l.b16 %v1609
          %v1633 = vunpack.c.l.b16 %v1610
          %v1634 = vunpack.c.l.b16 %v1611
          %v1635 = vunpack.c.l.b16 %v1612
          %v1636 = vpack.c.b16 %v1629, %v1628
          %v1637 = vpack.c.b16 %v1631, %v1630
          %v1638 = vpack.c.b16 %v1633, %v1632
          %v1639 = vpack.c.b16 %v1635, %v1634
          %vm1644 = vcmask 523264
          %v1646 = vsel %vm1644, %v1604, 0
          %1648 = vmatprep.subr.bf16.mxu0 0
          %1649 = vmatpush1.bf16.msra.mxu0 %v1636
          %1650 = vmatprep.subr.bf16.mxu0 0
          %1651 = vmatpush1.bf16.msra.mxu0 %v1637
          %1652 = vmatprep.subr.bf16.mxu0 0
          %1653 = vmatpush1.bf16.msra.mxu0 %v1638
          %1654 = vmatprep.subr.bf16.mxu0 0
          %1655 = vmatpush1.bf16.msra.mxu0 %v1639
          %1656 = vmatprep.subr.bf16.mxu0 0
          %1657 = vmatpush1.bf16.msra.mxu0 0
          %1658 = vmatprep.subr.bf16.mxu0 0
          %1659 = vmatpush1.bf16.msra.mxu0 0
          %1660 = vmatprep.subr.bf16.mxu0 0
          %1661 = vmatpush1.bf16.msra.mxu0 0
          %1662 = vmatprep.subr.bf16.mxu0 0
          %1663 = vmatpush1.bf16.msra.mxu0 0
          %1664 = vmatprep.subr.bf16.mxu0 0
          %1665 = vmatpush1.bf16.msra.mxu0 0
          %1666 = vmatprep.subr.bf16.mxu0 0
          %1667 = vmatpush1.bf16.msra.mxu0 0
          %1668 = vmatprep.subr.bf16.mxu0 0
          %1669 = vmatpush1.bf16.msra.mxu0 0
          %1670 = vmatprep.subr.bf16.mxu0 0
          %1671 = vmatpush1.bf16.msra.mxu0 0
          %1672 = vmatprep.subr.bf16.mxu0 0
          %1673 = vmatpush1.bf16.msra.mxu0 0
          %1674 = vmatprep.subr.bf16.mxu0 0
          %1675 = vmatpush1.bf16.msra.mxu0 0
          %1676 = vmatprep.subr.bf16.mxu0 0
          %1677 = vmatpush1.bf16.msra.mxu0 0
          %1678 = vmatprep.subr.bf16.mxu0 0
          %1679 = vmatpush1.bf16.msra.mxu0 0
          %1680 = vmatprep.mubr.bf16.mxu0 0
          %1681 = vmatmul.mubr.bf16.gmra.mrb[0].mxu0 %v1646
          %v1682 = vpop.f32.mrb[0].mxu0
          %v1683 = vadd.f32 %v1618, %v1682
          %v1684 = vpop.f32.mrb[0].mxu0
          %v1685 = vpop.f32.mrb[0].mxu0
          %v1686 = vadd.f32 %v1618, %v1685
          %v1687 = vpop.f32.mrb[0].mxu0
          %1688 = vdwg.mxu0
          %v1689 = vadd.f32 %v1480, %v1683
          %v1690 = vadd.f32 %v1481, %v1686
          %v1691 = vld [vmem:[%s754] sm:$0x1]
          %v1692 = vld [vmem:[%s757] sm:$0x1]
          %v1693 = vsel %vm795, %v1689, 0.0
          %1694 = vadd.xlane.f32.xlu0 %v1693
          %v1695 = vpop.xlane.xlu0 %1694
          %v1696 = vsel %vm795, %v1690, 0.0
          %1697 = vadd.xlane.f32.xlu0 %v1696
          %v1698 = vpop.xlane.xlu0 %1697
          %v1699 = vmul.f32 %v1695, %v1445
          %v1700 = vmul.f32 %v1698, %v1445
          %v1701 = vsub.f32 %v1689, %v1699
          %v1702 = vsub.f32 %v1690, %v1700
          %v1703 = vmul.f32 %v1701, %v1701
          %v1704 = vmul.f32 %v1702, %v1702
          %v1705 = vsel %vm795, %v1703, 0.0
          %1706 = vadd.xlane.f32.xlu0 %v1705
          %v1707 = vpop.xlane.xlu0 %1706
          %v1708 = vsel %vm795, %v1704, 0.0
          %1709 = vadd.xlane.f32.xlu0 %v1708
          %v1710 = vpop.xlane.xlu0 %1709
          %v1711 = vmul.f32 %v1707, %v1445
          %v1712 = vmul.f32 %v1710, %v1445
          %v1713 = vadd.f32 %v1711, 1e-12
          %v1714 = vadd.f32 %v1712, 1e-12
          %v1715 = vrsqrt.pop %v1713
          %v1716 = vrsqrt.pop %v1714
          %v1717 = vmul.f32 %v1701, %v1715
          %v1718 = vmul.f32 %v1702, %v1716
          %v1720 = vlaneseq
          %v1721 = vshrl.u32 %v1720, 7
          %v1722 = vsub.s32 0, %v1721
          %v1723 = vrot.slane %v1691, %v1722
          %v1725 = vmul.f32 %v1717, %v1723
          %v1726 = vmul.f32 %v1718, %v1723
          %v1728 = vlaneseq
          %v1729 = vshrl.u32 %v1728, 7
          %v1730 = vsub.s32 0, %v1729
          %v1731 = vrot.slane %v1692, %v1730
          %v1733 = vadd.f32 %v1725, %v1731
          %v1734 = vadd.f32 %v1726, %v1731
          %1735 = vst.msk [vmem:[#allocation2] sm:$0xff] %vm795, %v1733
          %1736 = vst.msk [vmem:[#allocation2 + $0x8] sm:$0xff] %vm795, %v1734
        $region104: #{tpu_custom_call.1} parent=75 // pred_fallthru
          _
        %p1737 = scmp.eq.s32.totalorder %s38, 1
        // Predicated region
        $region105: #{tpu_custom_call.1} parent=75 // pred_check
          %p1738 = pneg %p1737
        $region106: #{tpu_custom_call.1} parent=75 // pred_check_branch
          %1740 = sbr.rel (%p1738) target = $region108
        $region107: #{tpu_custom_call.1} parent=75 // pred_region
          %v1741 = vld [vmem:[%s610] sm:$0x1]
          %v1742 = vpack.c.bf16 %v1043, %v1043
          %v1743 = vpack.c.bf16 %v1091, %v1091
          %v1744 = vpack.c.bf16 %v1263, %v1263
          %v1745 = vpack.c.bf16 %v1311, %v1311
          %v1748 = vunpack.c.l.b16 %v1744
          %v1749 = vunpack.c.l.b16 %v1745
          %v1750 = vrot.slane %v1749, 7
          %vm1751 = vcmask 1041409
          %v1752 = vsel %vm1751, %v1750, %v1748
          %v1753 = vpack.c.b16 %v1752, %v1752
          %v1756 = vunpack.c.l.b16 %v1318
          %v1757 = vunpack.c.l.b16 %v1319
          %v1758 = vpack.c.b16 %v1757, %v1756
          %v1761 = vsel %vm878, %v1753, 0
          %1763 = vmatprep.subr.bf16.mxu0 0
          %1764 = vmatpush1.bf16.msra.mxu0 %v1758
          %1765 = vmatprep.subr.bf16.mxu0 0
          %1766 = vmatpush1.bf16.msra.mxu0 0
          %1767 = vmatprep.subr.bf16.mxu0 0
          %1768 = vmatpush1.bf16.msra.mxu0 0
          %1769 = vmatprep.subr.bf16.mxu0 0
          %1770 = vmatpush1.bf16.msra.mxu0 0
          %1771 = vmatprep.subr.bf16.mxu0 0
          %1772 = vmatpush1.bf16.msra.mxu0 0
          %1773 = vmatprep.subr.bf16.mxu0 0
          %1774 = vmatpush1.bf16.msra.mxu0 0
          %1775 = vmatprep.subr.bf16.mxu0 0
          %1776 = vmatpush1.bf16.msra.mxu0 0
          %1777 = vmatprep.subr.bf16.mxu0 0
          %1778 = vmatpush1.bf16.msra.mxu0 0
          %1779 = vmatprep.subr.bf16.mxu0 0
          %1780 = vmatpush1.bf16.msra.mxu0 0
          %1781 = vmatprep.subr.bf16.mxu0 0
          %1782 = vmatpush1.bf16.msra.mxu0 0
          %1783 = vmatprep.subr.bf16.mxu0 0
          %1784 = vmatpush1.bf16.msra.mxu0 0
          %1785 = vmatprep.subr.bf16.mxu0 0
          %1786 = vmatpush1.bf16.msra.mxu0 0
          %1787 = vmatprep.subr.bf16.mxu0 0
          %1788 = vmatpush1.bf16.msra.mxu0 0
          %1789 = vmatprep.subr.bf16.mxu0 0
          %1790 = vmatpush1.bf16.msra.mxu0 0
          %1791 = vmatprep.subr.bf16.mxu0 0
          %1792 = vmatpush1.bf16.msra.mxu0 0
          %1793 = vmatprep.subr.bf16.mxu0 0
          %1794 = vmatpush1.bf16.msra.mxu0 0
          %1795 = vmatprep.mubr.bf16.mxu0 0
          %1796 = vmatmul.mubr.bf16.gmra.mrb[0].mxu0 %v1761
          %v1797 = vpop.f32.mrb[0].mxu0
          %v1798 = vadd.f32 0.0, %v1797
          %v1799 = vpop.f32.mrb[0].mxu0
          %v1800 = vpop.f32.mrb[0].mxu0
          %v1801 = vpop.f32.mrb[0].mxu0
          %1802 = vdwg.mxu0
          %v1805 = vunpack.c.l.b16 %v1742
          %v1806 = vunpack.c.l.b16 %v1743
          %v1807 = vrot.slane %v1806, 7
          %v1808 = vsel %vm1751, %v1807, %v1805
          %v1809 = vpack.c.b16 %v1808, %v1808
          %v1812 = vunpack.c.l.b16 %v1316
          %v1813 = vunpack.c.l.b16 %v1317
          %v1814 = vpack.c.b16 %v1813, %v1812
          %v1817 = vsel %vm878, %v1809, 0
          %1819 = vmatprep.subr.bf16.mxu0 0
          %1820 = vmatpush1.bf16.msra.mxu0 %v1814
          %1821 = vmatprep.subr.bf16.mxu0 0
          %1822 = vmatpush1.bf16.msra.mxu0 0
          %1823 = vmatprep.subr.bf16.mxu0 0
          %1824 = vmatpush1.bf16.msra.mxu0 0
          %1825 = vmatprep.subr.bf16.mxu0 0
          %1826 = vmatpush1.bf16.msra.mxu0 0
          %1827 = vmatprep.subr.bf16.mxu0 0
          %1828 = vmatpush1.bf16.msra.mxu0 0
          %1829 = vmatprep.subr.bf16.mxu0 0
          %1830 = vmatpush1.bf16.msra.mxu0 0
          %1831 = vmatprep.subr.bf16.mxu0 0
          %1832 = vmatpush1.bf16.msra.mxu0 0
          %1833 = vmatprep.subr.bf16.mxu0 0
          %1834 = vmatpush1.bf16.msra.mxu0 0
          %1835 = vmatprep.subr.bf16.mxu0 0
          %1836 = vmatpush1.bf16.msra.mxu0 0
          %1837 = vmatprep.subr.bf16.mxu0 0
          %1838 = vmatpush1.bf16.msra.mxu0 0
          %1839 = vmatprep.subr.bf16.mxu0 0
          %1840 = vmatpush1.bf16.msra.mxu0 0
          %1841 = vmatprep.subr.bf16.mxu0 0
          %1842 = vmatpush1.bf16.msra.mxu0 0
          %1843 = vmatprep.subr.bf16.mxu0 0
          %1844 = vmatpush1.bf16.msra.mxu0 0
          %1845 = vmatprep.subr.bf16.mxu0 0
          %1846 = vmatpush1.bf16.msra.mxu0 0
          %1847 = vmatprep.subr.bf16.mxu0 0
          %1848 = vmatpush1.bf16.msra.mxu0 0
          %1849 = vmatprep.subr.bf16.mxu0 0
          %1850 = vmatpush1.bf16.msra.mxu0 0
          %1851 = vmatprep.mubr.bf16.mxu0 0
          %1852 = vmatmul.mubr.bf16.gmra.mrb[0].mxu0 %v1817
          %v1853 = vpop.f32.mrb[0].mxu0
          %v1854 = vadd.f32 %v1798, %v1853
          %v1855 = vpop.f32.mrb[0].mxu0
          %v1856 = vpop.f32.mrb[0].mxu0
          %v1857 = vpop.f32.mrb[0].mxu0
          %1858 = vdwg.mxu0
          %v1860 = vlaneseq
          %v1861 = vshrl.u32 %v1860, 7
          %v1862 = vsub.s32 0, %v1861
          %v1863 = vrot.slane %v1741, %v1862
          %v1865 = vadd.f32 %v1863, %v1854
          %v1867 = vrot.slane %v1865, 1
          %v1870 = vadd.f32 %v768, %v1865
          %v1871 = vadd.f32 %v769, %v1867
          %v1872 = vld [vmem:[%s618] sm:$0x1]
          %v1873 = vld [vmem:[%s626] sm:$0x1]
          %v1876 = vrot.slane %v1871, 7
          %v1877 = vsel %vm1751, %v1876, %v1870
          %vm1879 = vcmask 254976
          %v1880 = vsel %vm1879, %v1877, 0.0
          %1881 = vadd.xlane.f32.xlu0 %v1880
          %v1882 = vpop.xlane.xlu0 %1881
          %v1883 = vrcp.pop 32.0
          %v1884 = vmul.f32 %v1882, %v1883
          %v1886 = vrot.slane %v1884, 1
          %v1889 = vsub.f32 %v1870, %v1884
          %v1890 = vsub.f32 %v1871, %v1886
          %v1891 = vmul.f32 %v1889, %v1889
          %v1892 = vmul.f32 %v1890, %v1890
          %v1895 = vrot.slane %v1892, 7
          %v1896 = vsel %vm1751, %v1895, %v1891
          %v1898 = vsel %vm1879, %v1896, 0.0
          %1899 = vadd.xlane.f32.xlu0 %v1898
          %v1900 = vpop.xlane.xlu0 %1899
          %v1901 = vmul.f32 %v1900, %v1883
          %v1902 = vadd.f32 %v1901, 1e-12
          %v1903 = vrsqrt.pop %v1902
          %v1905 = vrot.slane %v1903, 1
          %v1908 = vmul.f32 %v1889, %v1903
          %v1909 = vmul.f32 %v1890, %v1905
          %v1911 = vlaneseq
          %v1912 = vshrl.u32 %v1911, 7
          %v1913 = vsub.s32 0, %v1912
          %v1914 = vrot.slane %v1872, %v1913
          %v1916 = vmul.f32 %v1908, %v1914
          %v1917 = vmul.f32 %v1909, %v1914
          %v1919 = vlaneseq
          %v1920 = vshrl.u32 %v1919, 7
          %v1921 = vsub.s32 0, %v1920
          %v1922 = vrot.slane %v1873, %v1921
          %v1924 = vadd.f32 %v1916, %v1922
          %v1925 = vadd.f32 %v1917, %v1922
          %v1926 = vpack.c.bf16 %v1924, %v1924
          %v1927 = vpack.c.bf16 %v1925, %v1925
          %v1928 = vld [vmem:[%s743] sm:$0xf]
          %v1929 = vld [vmem:[%s743 + $0x4] sm:$0xf]
          %v1930 = vld [vmem:[%s743 + $0x8] sm:$0xf]
          %v1931 = vld [vmem:[%s743 + $0xc] sm:$0xf]
          %v1932 = vld [vmem:[%s634] sm:$0x1]
          %v1934 = vlaneseq
          %v1935 = vshrl.u32 %v1934, 7
          %v1936 = vsub.s32 0, %v1935
          %v1937 = vrot.slane %v1932, %v1936
          %v1941 = vunpack.c.l.b16 %v1926
          %v1942 = vunpack.c.l.b16 %v1927
          %v1943 = vrot.slane %v1942, 7
          %v1944 = vsel %vm1751, %v1943, %v1941
          %v1945 = vpack.c.b16 %v1944, %v1944
          %v1950 = vunpack.c.l.b16 %v1928
          %v1951 = vunpack.c.l.b16 %v1929
          %v1952 = vunpack.c.l.b16 %v1930
          %v1953 = vunpack.c.l.b16 %v1931
          %v1954 = vpack.c.b16 %v1951, %v1950
          %v1955 = vpack.c.b16 %v1953, %v1952
          %v1959 = vsel %vm795, %v1945, 0
          %1961 = vmatprep.subr.bf16.mxu0 0
          %1962 = vmatpush1.bf16.msra.mxu0 %v1954
          %1963 = vmatprep.subr.bf16.mxu0 0
          %1964 = vmatpush1.bf16.msra.mxu0 %v1955
          %1965 = vmatprep.subr.bf16.mxu0 0
          %1966 = vmatpush1.bf16.msra.mxu0 0
          %1967 = vmatprep.subr.bf16.mxu0 0
          %1968 = vmatpush1.bf16.msra.mxu0 0
          %1969 = vmatprep.subr.bf16.mxu0 0
          %1970 = vmatpush1.bf16.msra.mxu0 0
          %1971 = vmatprep.subr.bf16.mxu0 0
          %1972 = vmatpush1.bf16.msra.mxu0 0
          %1973 = vmatprep.subr.bf16.mxu0 0
          %1974 = vmatpush1.bf16.msra.mxu0 0
          %1975 = vmatprep.subr.bf16.mxu0 0
          %1976 = vmatpush1.bf16.msra.mxu0 0
          %1977 = vmatprep.subr.bf16.mxu0 0
          %1978 = vmatpush1.bf16.msra.mxu0 0
          %1979 = vmatprep.subr.bf16.mxu0 0
          %1980 = vmatpush1.bf16.msra.mxu0 0
          %1981 = vmatprep.subr.bf16.mxu0 0
          %1982 = vmatpush1.bf16.msra.mxu0 0
          %1983 = vmatprep.subr.bf16.mxu0 0
          %1984 = vmatpush1.bf16.msra.mxu0 0
          %1985 = vmatprep.subr.bf16.mxu0 0
          %1986 = vmatpush1.bf16.msra.mxu0 0
          %1987 = vmatprep.subr.bf16.mxu0 0
          %1988 = vmatpush1.bf16.msra.mxu0 0
          %1989 = vmatprep.subr.bf16.mxu0 0
          %1990 = vmatpush1.bf16.msra.mxu0 0
          %1991 = vmatprep.subr.bf16.mxu0 0
          %1992 = vmatpush1.bf16.msra.mxu0 0
          %1993 = vmatprep.mubr.bf16.mxu0 0
          %1994 = vmatmul.mubr.bf16.gmra.mrb[0].mxu0 %v1959
          %v1995 = vpop.f32.mrb[0].mxu0
          %v1996 = vadd.f32 %v1937, %v1995
          %v1997 = vpop.f32.mrb[0].mxu0
          %v1998 = vpop.f32.mrb[0].mxu0
          %v1999 = vpop.f32.mrb[0].mxu0
          %2000 = vdwg.mxu0
          %v2001 = vmul.f32 %v1996, 0.5
          %v2002 = vmul.f32 %v1996, 0.70710677
          %v2003 = vand.u32 2147483647, %v2002
          %v2004 = vmul.f32 %v2003, 0.3275911
          %v2005 = vadd.f32 %v2004, 1.0
          %v2006 = vrcp.pop %v2005
          %v2007 = vmul.f32 1.0, %v2006
          %v2008 = vmul.f32 %v2007, 1.0614054
          %v2009 = vadd.f32 %v2008, -1.4531521
          %v2010 = vmul.f32 %v2009, %v2007
          %v2011 = vadd.f32 %v2010, 1.4214138
          %v2012 = vmul.f32 %v2011, %v2007
          %v2013 = vadd.f32 %v2012, -0.28449672
          %v2014 = vmul.f32 %v2013, %v2007
          %v2015 = vadd.f32 %v2014, 0.2548296
          %v2016 = vmul.f32 %v2015, %v2007
          %v2017 = vsub.f32 0.0, %v2003
          %v2018 = vmul.f32 %v2017, %v2003
          %v2019 = vmul.f32 %v2018, 1.442695
          %v2020 = vpow.pop %v2019
          %v2021 = vmul.f32 %v2016, %v2020
          %v2022 = vsub.f32 1.0, %v2021
          %vm2023 = vcmp.ge.f32.partialorder %v2002, 0.0
          %v2024 = vsub.f32 0.0, %v2022
          %v2025 = vsel %vm2023, %v2022, %v2024
          %v2026 = vadd.f32 %v2025, 1.0
          %v2027 = vmul.f32 %v2001, %v2026
          %v2028 = vpack.c.bf16 %v2027, %v2027
          %v2029 = vld [vmem:[%s748] sm:$0xf]
          %v2030 = vld [vmem:[%s748 + $0x4] sm:$0xf]
          %v2031 = vld [vmem:[%s748 + $0x8] sm:$0xf]
          %v2032 = vld [vmem:[%s748 + $0xc] sm:$0xf]
          %v2033 = vld [vmem:[%s748 + $0x10] sm:$0xf]
          %v2034 = vld [vmem:[%s748 + $0x14] sm:$0xf]
          %v2035 = vld [vmem:[%s748 + $0x18] sm:$0xf]
          %v2036 = vld [vmem:[%s748 + $0x1c] sm:$0xf]
          %v2037 = vld [vmem:[%s751] sm:$0x1]
          %v2039 = vlaneseq
          %v2040 = vshrl.u32 %v2039, 7
          %v2041 = vsub.s32 0, %v2040
          %v2042 = vrot.slane %v2037, %v2041
          %v2052 = vunpack.c.l.b16 %v2029
          %v2053 = vunpack.c.l.b16 %v2030
          %v2054 = vunpack.c.l.b16 %v2031
          %v2055 = vunpack.c.l.b16 %v2032
          %v2056 = vunpack.c.l.b16 %v2033
          %v2057 = vunpack.c.l.b16 %v2034
          %v2058 = vunpack.c.l.b16 %v2035
          %v2059 = vunpack.c.l.b16 %v2036
          %v2060 = vpack.c.b16 %v2053, %v2052
          %v2061 = vpack.c.b16 %v2055, %v2054
          %v2062 = vpack.c.b16 %v2057, %v2056
          %v2063 = vpack.c.b16 %v2059, %v2058
          %vm2068 = vcmask 523264
          %v2070 = vsel %vm2068, %v2028, 0
          %2072 = vmatprep.subr.bf16.mxu0 0
          %2073 = vmatpush1.bf16.msra.mxu0 %v2060
          %2074 = vmatprep.subr.bf16.mxu0 0
          %2075 = vmatpush1.bf16.msra.mxu0 %v2061
          %2076 = vmatprep.subr.bf16.mxu0 0
          %2077 = vmatpush1.bf16.msra.mxu0 %v2062
          %2078 = vmatprep.subr.bf16.mxu0 0
          %2079 = vmatpush1.bf16.msra.mxu0 %v2063
          %2080 = vmatprep.subr.bf16.mxu0 0
          %2081 = vmatpush1.bf16.msra.mxu0 0
          %2082 = vmatprep.subr.bf16.mxu0 0
          %2083 = vmatpush1.bf16.msra.mxu0 0
          %2084 = vmatprep.subr.bf16.mxu0 0
          %2085 = vmatpush1.bf16.msra.mxu0 0
          %2086 = vmatprep.subr.bf16.mxu0 0
          %2087 = vmatpush1.bf16.msra.mxu0 0
          %2088 = vmatprep.subr.bf16.mxu0 0
          %2089 = vmatpush1.bf16.msra.mxu0 0
          %2090 = vmatprep.subr.bf16.mxu0 0
          %2091 = vmatpush1.bf16.msra.mxu0 0
          %2092 = vmatprep.subr.bf16.mxu0 0
          %2093 = vmatpush1.bf16.msra.mxu0 0
          %2094 = vmatprep.subr.bf16.mxu0 0
          %2095 = vmatpush1.bf16.msra.mxu0 0
          %2096 = vmatprep.subr.bf16.mxu0 0
          %2097 = vmatpush1.bf16.msra.mxu0 0
          %2098 = vmatprep.subr.bf16.mxu0 0
          %2099 = vmatpush1.bf16.msra.mxu0 0
          %2100 = vmatprep.subr.bf16.mxu0 0
          %2101 = vmatpush1.bf16.msra.mxu0 0
          %2102 = vmatprep.subr.bf16.mxu0 0
          %2103 = vmatpush1.bf16.msra.mxu0 0
          %2104 = vmatprep.mubr.bf16.mxu0 0
          %2105 = vmatmul.mubr.bf16.gmra.mrb[0].mxu0 %v2070
          %v2106 = vpop.f32.mrb[0].mxu0
          %v2107 = vadd.f32 %v2042, %v2106
          %v2108 = vpop.f32.mrb[0].mxu0
          %v2109 = vpop.f32.mrb[0].mxu0
          %v2110 = vpop.f32.mrb[0].mxu0
          %2111 = vdwg.mxu0
          %v2113 = vrot.slane %v2107, 1
          %v2116 = vadd.f32 %v1924, %v2107
          %v2117 = vadd.f32 %v1925, %v2113
          %v2118 = vld [vmem:[%s754] sm:$0x1]
          %v2119 = vld [vmem:[%s757] sm:$0x1]
          %v2122 = vrot.slane %v2117, 7
          %v2123 = vsel %vm1751, %v2122, %v2116
          %v2125 = vsel %vm1879, %v2123, 0.0
          %2126 = vadd.xlane.f32.xlu0 %v2125
          %v2127 = vpop.xlane.xlu0 %2126
          %v2128 = vmul.f32 %v2127, %v1883
          %v2130 = vrot.slane %v2128, 1
          %v2133 = vsub.f32 %v2116, %v2128
          %v2134 = vsub.f32 %v2117, %v2130
          %v2135 = vmul.f32 %v2133, %v2133
          %v2136 = vmul.f32 %v2134, %v2134
          %v2139 = vrot.slane %v2136, 7
          %v2140 = vsel %vm1751, %v2139, %v2135
          %v2142 = vsel %vm1879, %v2140, 0.0
          %2143 = vadd.xlane.f32.xlu0 %v2142
          %v2144 = vpop.xlane.xlu0 %2143
          %v2145 = vmul.f32 %v2144, %v1883
          %v2146 = vadd.f32 %v2145, 1e-12
          %v2147 = vrsqrt.pop %v2146
          %v2149 = vrot.slane %v2147, 1
          %v2152 = vmul.f32 %v2133, %v2147
          %v2153 = vmul.f32 %v2134, %v2149
          %v2155 = vlaneseq
          %v2156 = vshrl.u32 %v2155, 7
          %v2157 = vsub.s32 0, %v2156
          %v2158 = vrot.slane %v2118, %v2157
          %v2160 = vmul.f32 %v2152, %v2158
          %v2161 = vmul.f32 %v2153, %v2158
          %v2163 = vlaneseq
          %v2164 = vshrl.u32 %v2163, 7
          %v2165 = vsub.s32 0, %v2164
          %v2166 = vrot.slane %v2119, %v2165
          %v2168 = vadd.f32 %v2160, %v2166
          %v2169 = vadd.f32 %v2161, %v2166
          %v2172 = vrot.slane %v2169, 7
          %v2173 = vsel %vm1751, %v2172, %v2168
          %2175 = vst.msk [vmem:[#allocation12] sm:$0x3] %vm1879, %v2173
        $region108: #{tpu_custom_call.1} parent=75 // pred_fallthru
          _
        // Predicated region
        $region109: #{tpu_custom_call.1} parent=75 // pred_check
          %p2176 = pneg %p427
        $region110: #{tpu_custom_call.1} parent=75 // pred_check_branch
          %2178 = sbr.rel (%p2176) target = $region112
        $region111: #{tpu_custom_call.1} parent=75 // pred_region
          %s2180 = ssub.s32 32, 32
          %2181 = vsyncadd [#allocation5], %s2180
          %s2182 = smul.addr %s37, 32
          %s2183 = scalar_lea.hbm %s14, %s2182
          %s2185 = sshll.u32 [#allocation12], 4
          %s2186 = int_to_ptr.vmem [resolvable:$true] %s2185
          %2188 = dma.vmem_to_hbm [thread:$0]  %s2186, 32, %s2183, [#allocation5]
        $region112: #{tpu_custom_call.1} parent=75 // pred_fallthru
          _
        // Predicated region
        $region113: #{tpu_custom_call.1} parent=75 // pred_check
          %p2189 = pneg %p427
        $region114: #{tpu_custom_call.1} parent=75 // pred_check_branch
          %2191 = sbr.rel (%p2189) target = $region116
        $region115: #{tpu_custom_call.1} parent=75 // pred_region
          %2192 = dma.done [#allocation5], 32
        $region116: #{tpu_custom_call.1} parent=75 // pred_fallthru
          _
      $region76: #{tpu_custom_call.1} parent=5 // pred_fallthru
        _
      %p2193 = scmp.le.s32.totalorder 2, %s28
      // Predicated region
      $region117: #{tpu_custom_call.1} parent=5 // pred_check
        %p2194 = pneg %p2193
      $region118: #{tpu_custom_call.1} parent=5 // pred_check_branch
        %2196 = sbr.rel (%p2194) target = $region120
      $region119: #{tpu_custom_call.1} parent=5 // pred_region
        %s2197 = ssub.s32 %s28, 2
      $region120: #{tpu_custom_call.1} parent=5 // pred_fallthru
        _
    $region6: #{tpu_custom_call.1} parent=1 // loop_footer
      %s32 = sadd.s32 1, %s28
    $region7: #{tpu_custom_call.1} parent=1 // loop_footer_branch
      %27 = sbr.rel target = $region3
    $region8: #{tpu_custom_call.1} parent=1 // loop_exit
      _
    %2198 = vsyncpa [#allocation4], 1
    %s2199 = scalar_lea.sflag [#allocation4], 1
    %2200 = vsyncpa %s2199, 1
    %2201 = vsyncpa [#allocation7], 1
    %s2202 = scalar_lea.sflag [#allocation7], 1
    %2203 = vsyncpa %s2202, 1
    %2204 = vsyncpa [#allocation10], 1
    %s2205 = scalar_lea.sflag [#allocation10], 1
    %2206 = vsyncpa %s2205, 1
    %2207 = vsyncpa [#allocation5], 1
    %s2208 = scalar_lea.sflag [#allocation5], 1
    %2209 = vsyncpa %s2208, 1

</llo_original>
